<compile_context>
chip_gen: v6e
topology: v6e:2x2x1
jax: 0.10.0
libtpu: 0.0.40
codegen_flags: <defaults>
</compile_context>

<pallas_src>
import jax
import jax.numpy as jnp
import numpy as np
from jax import lax
from jax.experimental import pallas as pl
from jax.experimental.pallas import tpu as pltpu

EPS = 1e-5


# --------------------------------- kernel ---------------------------------

def _decoder_block_kernel(x_ref, xh_ref, w1_ref, b1_ref, w2_ref, b2_ref,
                          w3_ref, b3_ref, o_ref):
    f32 = jnp.float32
    cdt = w1_ref.dtype                        # matmul compute dtype (bf16 / f32)

    _, th, W, m = x_ref.shape
    C1 = w1_ref.shape[1]
    n4 = w3_ref.shape[1]                      # 4 * n_out (phase-packed lanes)
    two_n = n4 // 2
    R = th * W

    # ---- stage 1: 1x1 conv (+ folded BN1) + ReLU, tile rows + one halo row ----
    x = x_ref[0].reshape(R, m)
    y1 = jnp.dot(x, w1_ref[...], preferred_element_type=f32) + b1_ref[...]
    y1 = jnp.maximum(y1, 0.0).astype(cdt).reshape(th, W, C1)

    xh = xh_ref[0, 0]                         # (W, m): row just below the tile
    yh = jnp.dot(xh, w1_ref[...], preferred_element_type=f32) + b1_ref[...]
    not_last = (pl.program_id(1) < pl.num_programs(1) - 1).astype(f32)
    yh = (jnp.maximum(yh, 0.0) * not_last).astype(cdt)   # last tile: no row below

    # ---- sub-pixel taps: c = y1[a, b], d = y1[a+1, b], r = y1[a, b+1], dr = y1[a+1, b+1]
    full = jnp.concatenate([y1, yh[None]], axis=0)        # (th+1, W, C1)
    c = full[:th]                                         # leading-dim slices: cheap
    d = full[1:]
    cd = jnp.concatenate([c, d], axis=-1)                 # (th, W, 2*C1)
    zcol = jnp.zeros((th, 1, 2 * C1), cdt)
    rdr = jnp.concatenate([cd[:, 1:, :], zcol], axis=1)   # shift by one column, zero fill
    a_stk = jnp.concatenate([cd, rdr], axis=-1).reshape(R, 4 * C1)   # [c, d, r, dr]

    # ---- stage 2: all 4 deconv output phases in ONE matmul (+ folded BN2) + ReLU ----
    y2 = jnp.dot(a_stk, w2_ref[...], preferred_element_type=f32) + b2_ref[...]
    y2 = jnp.maximum(y2, 0.0).astype(cdt)                 # (R, 4*C1) phase-packed

    # ---- stage 3: 1x1 conv3 (+ folded BN3) + ReLU, block-diagonal over the 4 phases ----
    y3 = jnp.dot(y2, w3_ref[...], preferred_element_type=f32) + b3_ref[...]
    y3 = jnp.maximum(y3, 0.0).astype(o_ref.dtype).reshape(th, W, n4)
    # lane layout inside n4: py*2n + px*n + ch  (phases 00, 01, 10, 11)

    # ---- lane-dense output: o[b, a, py*(2Wn) + bcol*2n + px*n + ch] ----
    half = W * two_n
    even = y3[:, :, :two_n].reshape(th, half)             # output row 2a
    odd = y3[:, :, two_n:].reshape(th, half)              # output row 2a+1
    o_ref[0, :, 0:half] = even
    o_ref[0, :, half:2 * half] = odd


# --------------------------------- wrapper ---------------------------------

def _pick_row_tile(H, W):
    """Largest useful multiple-of-8 divisor of H targeting R = th*W in ~[1024, 4096]."""
    best = None
    for th in range(8, H + 1, 8):
        if H % th:
            continue
        if best is None or th * W <= 4096:
            best = th
        if th * W >= 1024:
            break
    return best if best is not None else H


def decoder_block_forward(x, params, *, row_tile=None):
    """x: (N, H, W, m) NHWC.  Returns (N, 2H, 2W, n) in the params' compute dtype."""
    N, H, W, m = x.shape
    C1 = params["w1"].shape[1]
    n4 = params["w3p"].shape[1]
    n_out = n4 // 4
    cdt = params["w1"].dtype

    th = row_tile if row_tile is not None else _pick_row_tile(H, W)
    assert H % th == 0
    n_tiles = H // th
    lane_out = 4 * W * n_out                  # 2 output rows x 2W cols x n, packed on lanes

    xc = x.astype(cdt)

    out = pl.pallas_call(
        _decoder_block_kernel,
        out_shape=jax.ShapeDtypeStruct((N, H, lane_out), cdt),
        grid=(N, n_tiles),
        in_specs=[
            # main tile
            pl.BlockSpec((1, th, W, m), lambda b, i: (b, i, 0, 0)),
            # halo row just below the tile (clamped; kernel zeroes it on the last tile)
            pl.BlockSpec((1, 1, W, m),
                         lambda b, i: (b, jnp.minimum((i + 1) * th, H - 1), 0, 0)),
            pl.BlockSpec((m, C1), lambda b, i: (0, 0)),
            pl.BlockSpec((1, C1), lambda b, i: (0, 0)),
            pl.BlockSpec((4 * C1, 4 * C1), lambda b, i: (0, 0)),
            pl.BlockSpec((1, 4 * C1), lambda b, i: (0, 0)),
            pl.BlockSpec((4 * C1, n4), lambda b, i: (0, 0)),
            pl.BlockSpec((1, n4), lambda b, i: (0, 0)),
        ],
        out_specs=pl.BlockSpec((1, th, lane_out), lambda b, i: (b, i, 0)),
        compiler_params=pltpu.CompilerParams(
            dimension_semantics=("parallel", "parallel"),
            vmem_limit_bytes=48 << 20),        # safe on v7x's 64 MiB VMEM too
    )(xc, xc, params["w1"], params["b1"], params["w2p"], params["b2p"],
      params["w3p"], params["b3p"])

    # (N, H, 4*W*n) -> (N, 2H, 2W, n): contiguous row-major merge (free reshape)
    return out.reshape(N, 2 * H, 2 * W, n_out)


# ----------------------- parameter setup (plain JAX glue) -----------------------

def _fold_bn(conv_bias, gamma, beta, mean, var):
    s = gamma / jnp.sqrt(var + EPS)
    return s, (conv_bias - mean) * s + beta


def fold_params(raw, dtype=jnp.bfloat16):
    """Fold inference BatchNorm into the conv weights/biases and pack the
    transposed-conv taps + conv3 into two phase-packed matrices."""
    s1, b1 = _fold_bn(raw["conv1_b"], raw["bn1_g"], raw["bn1_b"], raw["bn1_m"], raw["bn1_v"])
    s2, b2 = _fold_bn(raw["deconv_b"], raw["bn2_g"], raw["bn2_b"], raw["bn2_m"], raw["bn2_v"])
    s3, b3 = _fold_bn(raw["conv3_b"], raw["bn3_g"], raw["bn3_b"], raw["bn3_m"], raw["bn3_v"])

    C1 = raw["conv1_w"].shape[0]

    w1 = raw["conv1_w"][:, :, 0, 0].T * s1[None, :]            # (m, C1)
    wd = raw["deconv_w"] * s2[None, :, None, None]             # (C1in, C1out, 3, 3)
    tap = lambda ky, kx: wd[:, :, ky, kx]                      # (C1, C1)
    Z = jnp.zeros((C1, C1), jnp.float32)

    # Packed stage-2 weight: row blocks = tap sources [c, d, r, dr] (matches the
    # kernel's operand concat order), column blocks = output phases
    # [(py,px)] = [(0,0), (0,1), (1,0), (1,1)].
    row_c = jnp.concatenate([tap(1, 1), tap(1, 2), tap(2, 1), tap(2, 2)], axis=1)
    row_d = jnp.concatenate([Z,         Z,         tap(0, 1), tap(0, 2)], axis=1)
    row_r = jnp.concatenate([Z,         tap(1, 0), Z,         tap(2, 0)], axis=1)
    row_dr = jnp.concatenate([Z,        Z,         Z,         tap(0, 0)], axis=1)
    w2p = jnp.concatenate([row_c, row_d, row_r, row_dr], axis=0)   # (4*C1, 4*C1)

    w3 = raw["conv3_w"][:, :, 0, 0].T * s3[None, :]            # (C1, n)
    w3p = jnp.kron(jnp.eye(4, dtype=jnp.float32), w3)          # block-diag (4*C1, 4*n)

    wcast = lambda a: a.astype(dtype)
    bcast = lambda a: a.reshape(1, -1).astype(jnp.float32)
    return dict(w1=wcast(w1), w2p=wcast(w2p), w3p=wcast(w3p),
                b1=bcast(b1), b2p=bcast(jnp.tile(b2, 4)), b3p=bcast(jnp.tile(b3, 4)))


def make_raw_params(key, m, n_out):
    """Deterministic synthetic parameters matching the PyTorch module's shapes."""
    C1 = m // 4
    ks = jax.random.split(key, 18)
    init = lambda k, shape, scale=0.1: scale * jax.random.normal(k, shape, jnp.float32)
    return dict(
        conv1_w=init(ks[0], (C1, m, 1, 1)),        # Conv2d(m, m//4, 1)
        conv1_b=init(ks[1], (C1,)),
        bn1_g=1.0 + init(ks[2], (C1,)), bn1_b=init(ks[3], (C1,)),
        bn1_m=init(ks[4], (C1,)), bn1_v=0.5 + jnp.abs(init(ks[5], (C1,))),
        deconv_w=init(ks[6], (C1, C1, 3, 3)),      # ConvTranspose2d(m//4, m//4, 3, 2, 1)
        deconv_b=init(ks[7], (C1,)),
        bn2_g=1.0 + init(ks[8], (C1,)), bn2_b=init(ks[9], (C1,)),
        bn2_m=init(ks[10], (C1,)), bn2_v=0.5 + jnp.abs(init(ks[11], (C1,))),
        conv3_w=init(ks[12], (n_out, C1, 1, 1)),   # Conv2d(m//4, n, 1)
        conv3_b=init(ks[13], (n_out,)),
        bn3_g=1.0 + init(ks[14], (n_out,)), bn3_b=init(ks[15], (n_out,)),
        bn3_m=init(ks[16], (n_out,)), bn3_v=0.5 + jnp.abs(init(ks[17], (n_out,))),
    )


# ----------------------- pure-JAX reference for sanity check -----------------------

def reference_forward(x, raw):
    dn = ("NHWC", "HWIO", "NHWC")

    def bn(y, g, b, mu, v):
        return (y - mu) / jnp.sqrt(v + EPS) * g + b

    w1 = jnp.transpose(raw["conv1_w"], (2, 3, 1, 0))
    y = lax.conv_general_dilated(x, w1, (1, 1), "VALID", dimension_numbers=dn) + raw["conv1_b"]
    y = jax.nn.relu(bn(y, raw["bn1_g"], raw["bn1_b"], raw["bn1_m"], raw["bn1_v"]))

    wc = jnp.flip(jnp.transpose(raw["deconv_w"], (2, 3, 0, 1)), axis=(0, 1))
    y = lax.conv_general_dilated(y, wc, (1, 1), ((1, 2), (1, 2)),
                                 lhs_dilation=(2, 2), dimension_numbers=dn) + raw["deconv_b"]
    y = jax.nn.relu(bn(y, raw["bn2_g"], raw["bn2_b"], raw["bn2_m"], raw["bn2_v"]))

    w3 = jnp.transpose(raw["conv3_w"], (2, 3, 1, 0))
    y = lax.conv_general_dilated(y, w3, (1, 1), "VALID", dimension_numbers=dn) + raw["conv3_b"]
    y = jax.nn.relu(bn(y, raw["bn3_g"], raw["bn3_b"], raw["bn3_m"], raw["bn3_v"]))
    return y


if __name__ == "__main__":
    N, m, n_out, H, W = 2, 16, 8, 16, 16
    key = jax.random.PRNGKey(0)
    kx, kp = jax.random.split(key)

    # NHWC input (PyTorch equivalent would be NCHW (N, m, H, W))
    x = jax.random.normal(kx, (N, H, W, m), jnp.float32)
    raw = make_raw_params(kp, m, n_out)
    ref = reference_forward(x, raw)

    fwd = jax.jit(decoder_block_forward)

    # 1) f32 weights: tight check of geometry / BN folding / phase packing
    out_f32 = jax.block_until_ready(fwd(x, fold_params(raw, jnp.float32)))
    assert out_f32.shape == (N, 2 * H, 2 * W, n_out), out_f32.shape
    np.testing.assert_allclose(np.asarray(out_f32), np.asarray(ref), atol=2e-3, rtol=2e-3)

    # 2) bf16 MXU path with bf16 output (deployment configuration), looser tolerance
    out_bf16 = jax.block_until_ready(fwd(x, fold_params(raw, jnp.bfloat16)))
    assert out_bf16.shape == (N, 2 * H, 2 * W, n_out), out_bf16.shape
    np.testing.assert_allclose(np.asarray(out_bf16.astype(jnp.float32)), np.asarray(ref),
                               atol=6e-2, rtol=6e-2)

    print("KERNEL_OK")
</pallas_src>

<mosaic_0001>
module attributes {stable_mosaic.version = 11 : i64} {
  func.func @_decoder_block_kernel(%arg0: i32, %arg1: i32, %arg2: memref<1x16x16x16xf32, #tpu.memory_space<vmem>>, %arg3: memref<1x1x16x16xf32, #tpu.memory_space<vmem>>, %arg4: memref<16x4xf32, #tpu.memory_space<vmem>>, %arg5: memref<1x4xf32, #tpu.memory_space<vmem>>, %arg6: memref<16x16xf32, #tpu.memory_space<vmem>>, %arg7: memref<1x16xf32, #tpu.memory_space<vmem>>, %arg8: memref<16x32xf32, #tpu.memory_space<vmem>>, %arg9: memref<1x32xf32, #tpu.memory_space<vmem>>, %arg10: memref<1x16x512xf32, #tpu.memory_space<vmem>>) attributes {dimension_semantics = [#tpu.dimension_semantics<parallel>, #tpu.dimension_semantics<parallel>], iteration_bounds = array<i64: 2, 1>, scalar_prefetch = 0 : i64, scratch_operands = 0 : i64, tpu.core_type = #tpu.core_type<tc>, window_params = [{transform_indices = @transform_0, window_bounds = array<i64: 1, 16, 16, 16>}, {transform_indices = @transform_1, window_bounds = array<i64: 1, 1, 16, 16>}, {pipeline_mode = #tpu.pipeline_mode<synchronous>, transform_indices = @transform_2, window_bounds = array<i64: 16, 4>}, {pipeline_mode = #tpu.pipeline_mode<synchronous>, transform_indices = @transform_3, window_bounds = array<i64: 1, 4>}, {pipeline_mode = #tpu.pipeline_mode<synchronous>, transform_indices = @transform_4, window_bounds = array<i64: 16, 16>}, {pipeline_mode = #tpu.pipeline_mode<synchronous>, transform_indices = @transform_5, window_bounds = array<i64: 1, 16>}, {pipeline_mode = #tpu.pipeline_mode<synchronous>, transform_indices = @transform_6, window_bounds = array<i64: 16, 32>}, {pipeline_mode = #tpu.pipeline_mode<synchronous>, transform_indices = @transform_7, window_bounds = array<i64: 1, 32>}, {transform_indices = @transform_8, window_bounds = array<i64: 1, 16, 512>}]} {
    %c0 = arith.constant 0 : index
    %c0_0 = arith.constant 0 : index
    %c0_1 = arith.constant 0 : index
    %c0_2 = arith.constant 0 : index
    %0 = vector.load %arg2[%c0, %c0_0, %c0_1, %c0_2] : memref<1x16x16x16xf32, #tpu.memory_space<vmem>>, vector<1x16x16x16xf32>
    %1 = vector.shape_cast %0 : vector<1x16x16x16xf32> to vector<16x16x16xf32>
    %2 = vector.shape_cast %1 : vector<16x16x16xf32> to vector<256x16xf32>
    %c0_3 = arith.constant 0 : index
    %c0_4 = arith.constant 0 : index
    %3 = vector.load %arg4[%c0_3, %c0_4] : memref<16x4xf32, #tpu.memory_space<vmem>>, vector<16x4xf32>
    %cst = arith.constant dense<0.000000e+00> : vector<256x4xf32>
    %4 = tpu.matmul %2, %3, %cst {dimension_numbers = #tpu.dot_dimension_numbers<[1], [0], [0], [1], [0, 0, 1, 1], [], []>} : vector<256x16xf32>, vector<16x4xf32>, vector<256x4xf32> -> vector<256x4xf32>
    %c0_5 = arith.constant 0 : index
    %c0_6 = arith.constant 0 : index
    %5 = vector.load %arg5[%c0_5, %c0_6] : memref<1x4xf32, #tpu.memory_space<vmem>>, vector<1x4xf32>
    %6 = vector.broadcast %5 : vector<1x4xf32> to vector<256x4xf32>
    %7 = arith.addf %4, %6 : vector<256x4xf32>
    %cst_7 = arith.constant 0.000000e+00 : f32
    %8 = vector.broadcast %cst_7 : f32 to vector<256x4xf32>
    %9 = arith.maximumf %7, %8 : vector<256x4xf32>
    %10 = vector.shape_cast %9 : vector<256x4xf32> to vector<16x16x4xf32>
    %c0_8 = arith.constant 0 : index
    %c0_9 = arith.constant 0 : index
    %c0_10 = arith.constant 0 : index
    %c0_11 = arith.constant 0 : index
    %11 = vector.load %arg3[%c0_8, %c0_9, %c0_10, %c0_11] : memref<1x1x16x16xf32, #tpu.memory_space<vmem>>, vector<1x1x16x16xf32>
    %12 = vector.shape_cast %11 : vector<1x1x16x16xf32> to vector<16x16xf32>
    %c0_12 = arith.constant 0 : index
    %c0_13 = arith.constant 0 : index
    %13 = vector.load %arg4[%c0_12, %c0_13] : memref<16x4xf32, #tpu.memory_space<vmem>>, vector<16x4xf32>
    %cst_14 = arith.constant dense<0.000000e+00> : vector<16x4xf32>
    %14 = tpu.matmul %12, %13, %cst_14 {dimension_numbers = #tpu.dot_dimension_numbers<[1], [0], [0], [1], [0, 0, 1, 1], [], []>} : vector<16x16xf32>, vector<16x4xf32>, vector<16x4xf32> -> vector<16x4xf32>
    %c0_15 = arith.constant 0 : index
    %c0_16 = arith.constant 0 : index
    %15 = vector.load %arg5[%c0_15, %c0_16] : memref<1x4xf32, #tpu.memory_space<vmem>>, vector<1x4xf32>
    %16 = vector.broadcast %15 : vector<1x4xf32> to vector<16x4xf32>
    %17 = arith.addf %14, %16 : vector<16x4xf32>
    %c0_i32 = arith.constant 0 : i32
    %18 = arith.cmpi slt, %arg1, %c0_i32 : i32
    %19 = arith.extui %18 : i1 to i32
    %20 = arith.sitofp %19 : i32 to f32
    %cst_17 = arith.constant 0.000000e+00 : f32
    %21 = vector.broadcast %cst_17 : f32 to vector<16x4xf32>
    %22 = arith.maximumf %17, %21 : vector<16x4xf32>
    %23 = vector.broadcast %20 : f32 to vector<16x4xf32>
    %24 = arith.mulf %22, %23 : vector<16x4xf32>
    %25 = vector.shape_cast %24 : vector<16x4xf32> to vector<1x16x4xf32>
    %26 = tpu.concatenate %10, %25 in 0 : vector<16x16x4xf32>, vector<1x16x4xf32> -> vector<17x16x4xf32>
    %27 = vector.extract_strided_slice %26 {offsets = [0, 0, 0], sizes = [16, 16, 4], strides = [1, 1, 1]} : vector<17x16x4xf32> to vector<16x16x4xf32>
    %28 = vector.extract_strided_slice %26 {offsets = [1, 0, 0], sizes = [16, 16, 4], strides = [1, 1, 1]} : vector<17x16x4xf32> to vector<16x16x4xf32>
    %29 = tpu.concatenate %27, %28 in 2 : vector<16x16x4xf32>, vector<16x16x4xf32> -> vector<16x16x8xf32>
    %cst_18 = arith.constant 0.000000e+00 : f32
    %30 = vector.broadcast %cst_18 : f32 to vector<16x1x8xf32>
    %31 = vector.extract_strided_slice %29 {offsets = [0, 1, 0], sizes = [16, 15, 8], strides = [1, 1, 1]} : vector<16x16x8xf32> to vector<16x15x8xf32>
    %32 = tpu.concatenate %31, %30 in 1 : vector<16x15x8xf32>, vector<16x1x8xf32> -> vector<16x16x8xf32>
    %33 = tpu.concatenate %29, %32 in 2 : vector<16x16x8xf32>, vector<16x16x8xf32> -> vector<16x16x16xf32>
    %34 = vector.shape_cast %33 : vector<16x16x16xf32> to vector<256x16xf32>
    %c0_19 = arith.constant 0 : index
    %c0_20 = arith.constant 0 : index
    %35 = vector.load %arg6[%c0_19, %c0_20] : memref<16x16xf32, #tpu.memory_space<vmem>>, vector<16x16xf32>
    %cst_21 = arith.constant dense<0.000000e+00> : vector<256x16xf32>
    %36 = tpu.matmul %34, %35, %cst_21 {dimension_numbers = #tpu.dot_dimension_numbers<[1], [0], [0], [1], [0, 0, 1, 1], [], []>} : vector<256x16xf32>, vector<16x16xf32>, vector<256x16xf32> -> vector<256x16xf32>
    %c0_22 = arith.constant 0 : index
    %c0_23 = arith.constant 0 : index
    %37 = vector.load %arg7[%c0_22, %c0_23] : memref<1x16xf32, #tpu.memory_space<vmem>>, vector<1x16xf32>
    %38 = vector.broadcast %37 : vector<1x16xf32> to vector<256x16xf32>
    %39 = arith.addf %36, %38 : vector<256x16xf32>
    %cst_24 = arith.constant 0.000000e+00 : f32
    %40 = vector.broadcast %cst_24 : f32 to vector<256x16xf32>
    %41 = arith.maximumf %39, %40 : vector<256x16xf32>
    %c0_25 = arith.constant 0 : index
    %c0_26 = arith.constant 0 : index
    %42 = vector.load %arg8[%c0_25, %c0_26] : memref<16x32xf32, #tpu.memory_space<vmem>>, vector<16x32xf32>
    %cst_27 = arith.constant dense<0.000000e+00> : vector<256x32xf32>
    %43 = tpu.matmul %41, %42, %cst_27 {dimension_numbers = #tpu.dot_dimension_numbers<[1], [0], [0], [1], [0, 0, 1, 1], [], []>} : vector<256x16xf32>, vector<16x32xf32>, vector<256x32xf32> -> vector<256x32xf32>
    %c0_28 = arith.constant 0 : index
    %c0_29 = arith.constant 0 : index
    %44 = vector.load %arg9[%c0_28, %c0_29] : memref<1x32xf32, #tpu.memory_space<vmem>>, vector<1x32xf32>
    %45 = vector.broadcast %44 : vector<1x32xf32> to vector<256x32xf32>
    %46 = arith.addf %43, %45 : vector<256x32xf32>
    %cst_30 = arith.constant 0.000000e+00 : f32
    %47 = vector.broadcast %cst_30 : f32 to vector<256x32xf32>
    %48 = arith.maximumf %46, %47 : vector<256x32xf32>
    %49 = vector.shape_cast %48 : vector<256x32xf32> to vector<16x16x32xf32>
    %50 = vector.extract_strided_slice %49 {offsets = [0, 0, 0], sizes = [16, 16, 16], strides = [1, 1, 1]} : vector<16x16x32xf32> to vector<16x16x16xf32>
    %51 = vector.shape_cast %50 : vector<16x16x16xf32> to vector<16x256xf32>
    %52 = vector.extract_strided_slice %49 {offsets = [0, 0, 16], sizes = [16, 16, 16], strides = [1, 1, 1]} : vector<16x16x32xf32> to vector<16x16x16xf32>
    %53 = vector.shape_cast %52 : vector<16x16x16xf32> to vector<16x256xf32>
    %c0_31 = arith.constant 0 : index
    %c0_32 = arith.constant 0 : index
    %c0_33 = arith.constant 0 : index
    %54 = vector.load %arg10[%c0_31, %c0_32, %c0_33] : memref<1x16x512xf32, #tpu.memory_space<vmem>>, vector<1x16x256xf32>
    %55 = vector.shape_cast %54 : vector<1x16x256xf32> to vector<16x256xf32>
    %56 = vector.shape_cast %51 : vector<16x256xf32> to vector<1x16x256xf32>
    tpu.vector_store %arg10[%c0_31, %c0_32, %c0_33], %56 {strides = array<i32>} : memref<1x16x512xf32, #tpu.memory_space<vmem>>, vector<1x16x256xf32>,
    %c0_34 = arith.constant 0 : index
    %c0_35 = arith.constant 0 : index
    %c256 = arith.constant 256 : index
    %57 = vector.load %arg10[%c0_34, %c0_35, %c256] : memref<1x16x512xf32, #tpu.memory_space<vmem>>, vector<1x16x256xf32>
    %58 = vector.shape_cast %57 : vector<1x16x256xf32> to vector<16x256xf32>
    %59 = vector.shape_cast %53 : vector<16x256xf32> to vector<1x16x256xf32>
    tpu.vector_store %arg10[%c0_34, %c0_35, %c256], %59 {strides = array<i32>} : memref<1x16x512xf32, #tpu.memory_space<vmem>>, vector<1x16x256xf32>,
    return
  }
  func.func @transform_0(%arg0: i32, %arg1: i32) -> (i32, i32, i32, i32) {
    %c0_i32 = arith.constant 0 : i32
    %c0_i32_0 = arith.constant 0 : i32
    %c0_i32_1 = arith.constant 0 : i32
    return %arg0, %arg1, %c0_i32, %c0_i32_0 : i32, i32, i32, i32
  }
  func.func @transform_1(%arg0: i32, %arg1: i32) -> (i32, i32, i32, i32) {
    %c1_i32 = arith.constant 1 : i32
    %0 = arith.addi %arg1, %c1_i32 : i32
    %c16_i32 = arith.constant 16 : i32
    %1 = arith.muli %0, %c16_i32 : i32
    %c15_i32 = arith.constant 15 : i32
    %2 = arith.minsi %1, %c15_i32 : i32
    %c0_i32 = arith.constant 0 : i32
    %c0_i32_0 = arith.constant 0 : i32
    %c0_i32_1 = arith.constant 0 : i32
    return %arg0, %2, %c0_i32, %c0_i32_0 : i32, i32, i32, i32
  }
  func.func @transform_2(%arg0: i32, %arg1: i32) -> (i32, i32) {
    %c0_i32 = arith.constant 0 : i32
    %c0_i32_0 = arith.constant 0 : i32
    %c0_i32_1 = arith.constant 0 : i32
    return %c0_i32, %c0_i32_0 : i32, i32
  }
  func.func @transform_3(%arg0: i32, %arg1: i32) -> (i32, i32) {
    %c0_i32 = arith.constant 0 : i32
    %c0_i32_0 = arith.constant 0 : i32
    %c0_i32_1 = arith.constant 0 : i32
    return %c0_i32, %c0_i32_0 : i32, i32
  }
  func.func @transform_4(%arg0: i32, %arg1: i32) -> (i32, i32) {
    %c0_i32 = arith.constant 0 : i32
    %c0_i32_0 = arith.constant 0 : i32
    %c0_i32_1 = arith.constant 0 : i32
    return %c0_i32, %c0_i32_0 : i32, i32
  }
  func.func @transform_5(%arg0: i32, %arg1: i32) -> (i32, i32) {
    %c0_i32 = arith.constant 0 : i32
    %c0_i32_0 = arith.constant 0 : i32
    %c0_i32_1 = arith.constant 0 : i32
    return %c0_i32, %c0_i32_0 : i32, i32
  }
  func.func @transform_6(%arg0: i32, %arg1: i32) -> (i32, i32) {
    %c0_i32 = arith.constant 0 : i32
    %c0_i32_0 = arith.constant 0 : i32
    %c0_i32_1 = arith.constant 0 : i32
    return %c0_i32, %c0_i32_0 : i32, i32
  }
  func.func @transform_7(%arg0: i32, %arg1: i32) -> (i32, i32) {
    %c0_i32 = arith.constant 0 : i32
    %c0_i32_0 = arith.constant 0 : i32
    %c0_i32_1 = arith.constant 0 : i32
    return %c0_i32, %c0_i32_0 : i32, i32
  }
  func.func @transform_8(%arg0: i32, %arg1: i32) -> (i32, i32, i32) {
    %c0_i32 = arith.constant 0 : i32
    %c0_i32_0 = arith.constant 0 : i32
    return %arg0, %arg1, %c0_i32 : i32, i32, i32
  }
}

</mosaic_0001>

<llo_original>
// kernel: decoder_block_forward.1
$region0: #{decoder_block_forward.1}
  #allocation0 [shape = 'u32[]', space=smem, size = 0x4, offset = 0x4, fixed_abs, tag = 'smem constant byte address 0x4 - core index']
  #allocation1 [shape = 'u32[144,128]{1,0:T(1,128)}', space=vmem, size = 0x12000, scoped, tag = 'internal scratch']
  %s0 = inlined_call_operand.hbm [shape: f32[2,16,16,16], index: 0, kind: input, shape index: {}, may-alias: {0,1}]
  %s1 = inlined_call_operand.hbm [shape: f32[2,16,16,16], index: 1, kind: input, shape index: {}, may-alias: {0,1}]
  %s2 = inlined_call_operand.vmem [shape: f32[16,4], index: 2, kind: input, shape index: {}]
  %s3 = inlined_call_operand.vmem [shape: f32[1,4], index: 3, kind: input, shape index: {}]
  %s4 = inlined_call_operand.vmem [shape: f32[16,16], index: 4, kind: input, shape index: {}]
  %s5 = inlined_call_operand.vmem [shape: f32[1,16], index: 5, kind: input, shape index: {}]
  %s6 = inlined_call_operand.hbm [shape: f32[16,32], index: 6, kind: input, shape index: {}]
  %s7 = inlined_call_operand.vmem [shape: f32[1,32], index: 7, kind: input, shape index: {}]
  %s8 = inlined_call_operand.vmem [shape: f32[2,16,512], index: 8, kind: output, shape index: {}]
  %s9 = sld [smem:[#allocation0]]
  $region77: #{decoder_block_forward.1} parent=0
    _
  %s11 = ssub.s32 1, %s9
  %s12 = scalar_select 0, %s11, %s9
  $region1: #{decoder_block_forward.1} parent=0
    #allocation2 [shape = 'u8[262144]{0}', space=vmem, size = 0x40000, scoped, tag = 'input window, operand 0']
    #allocation3 [shape = 's32[2]{0}', space=sflag, size = 0x8, scoped, tag = 'scoped memory for decoder_block_forward.1']
    #allocation4 [shape = 'u8[16384]{0}', space=vmem, size = 0x4000, scoped, tag = 'input window, operand 1']
    #allocation5 [shape = 's32[2]{0}', space=sflag, size = 0x8, scoped, tag = 'scoped memory for decoder_block_forward.1']
    #allocation6 [shape = 'u8[8192]{0}', space=vmem, size = 0x2000, scoped, tag = 'input window, operand 6, single buffered']
    %13 = vsyncpa [#allocation3], 0
    %s14 = scalar_lea.sflag [#allocation3], 1
    %15 = vsyncpa %s14, 0
    %16 = vsyncpa [#allocation5], 0
    %s17 = scalar_lea.sflag [#allocation5], 1
    %18 = vsyncpa %s17, 0
    loop: start=0, step=1, limit=4
    $region2: #{decoder_block_forward.1} parent=1 // loop_pre_header
      _
    $region3: #{decoder_block_forward.1} parent=1 // loop_header
      %s20 = sphi 0, %s24
      %p21 = scmp.ge.s32.totalorder %s20, 4
      %s27 = sphi 0, %s39
      %s28 = sphi 0, %s35
      %s29 = sphi 0, %s27
      %s30 = sphi 0, %s28
      %s31 = sphi 0, %s29
      %s32 = sphi 0, %s30
      %s44 = sphi 0, %s46
      %s47 = sphi 0, %s44
      %s48 = sphi 0, %s47
      %s64 = sphi 0, %s48
      %s80 = sphi 0, %s82
      %s83 = sphi 0, %s80
      %s84 = sphi 0, %s83
      %s100 = sphi 0, %s84
      %s104 = sphi 0, %s104
      %s106 = sphi 0, %s104
      %s107 = sphi 0, %s106
      %s121 = sphi 0, %s107
      %s125 = sphi 0, %s125
      %s127 = sphi 0, %s125
      %s128 = sphi 0, %s127
      %s142 = sphi 0, %s128
      %s146 = sphi 0, %s146
      %s148 = sphi 0, %s146
      %s149 = sphi 0, %s148
      %s163 = sphi 0, %s149
      %s167 = sphi 0, %s167
      %s169 = sphi 0, %s167
      %s170 = sphi 0, %s169
      %s184 = sphi 0, %s170
      %s188 = sphi 0, %s188
      %s190 = sphi 0, %s188
      %s191 = sphi 0, %s190
      %s205 = sphi 0, %s191
      %s209 = sphi 0, %s209
      %s211 = sphi 0, %s209
      %s212 = sphi 0, %s211
      %s226 = sphi 0, %s212
      %s234 = sphi 0, %s236
      %s237 = sphi 0, %s234
      %s238 = sphi 0, %s237
      %s254 = sphi 0, %s238
    $region4: #{decoder_block_forward.1} parent=1 // loop_header_branch
      %23 = sbr.rel (%p21) target = $region8
    $region5: #{decoder_block_forward.1} parent=1 // loop_body
      %s25 = ssub.s32 %s20, 1
      %s26 = ssub.s32 %s20, 2
      %s33 = sadd.s32 1, %s28
      %p34 = scmp.ge.s32.totalorder %s33, 1
      %s35 = scalar_select %p34, 0, %s33
      %s36 = sadd.s32 1, %s27
      %s37 = scalar_select %p34, %s36, %s27
      %p38 = scmp.ge.s32.totalorder %s37, 2
      %s39 = scalar_select %p38, 0, %s37
      %s40 = ssub.s32 %s27, %s39
      %s41 = ssub.s32 %s28, %s35
      %s42 = sor.u32 %s40, %s41
      %p43 = scmp.eq.s32.totalorder %s42, 0
      %s45 = sadd.s32 %s44, 1
      %s46 = scalar_select %p43, %s44, %s45
      %p49 = pneg %p43
      %p50 = scmp.eq.s32.totalorder %s20, 1
      %p51 = por %p49, %p50
      %p52 = scmp.ne.s32.totalorder %s44, %s47
      %p53 = scmp.eq.s32.totalorder %s20, 0
      %p54 = por %p52, %p53
      %p55 = scmp.ne.s32.totalorder %s44, %s47
      %p56 = scmp.eq.s32.totalorder %s25, 1
      %p57 = por %p55, %p56
      %p58 = scmp.ne.s32.totalorder %s47, %s48
      %p59 = scmp.eq.s32.totalorder %s25, 0
      %p60 = por %p58, %p59
      %p61 = scmp.ne.s32.totalorder %s47, %s48
      %p62 = scmp.eq.s32.totalorder %s26, 1
      %p63 = por %p61, %p62
      %p65 = scmp.ne.s32.totalorder %s48, %s64
      %p66 = scmp.eq.s32.totalorder %s26, 0
      %p67 = por %p65, %p66
      %s68 = sadd.s32 %s28, 1
      %s69 = smul.u32 %s68, 16
      %p70 = scmp.lt.s32.totalorder %s69, 15
      %s71 = scalar_select %p70, %s69, 15
      %s72 = sadd.s32 %s35, 1
      %s73 = smul.u32 %s72, 16
      %p74 = scmp.lt.s32.totalorder %s73, 15
      %s75 = scalar_select %p74, %s73, 15
      %s76 = ssub.s32 %s27, %s39
      %s77 = ssub.s32 %s71, %s75
      %s78 = sor.u32 %s76, %s77
      %p79 = scmp.eq.s32.totalorder %s78, 0
      %s81 = sadd.s32 %s80, 1
      %s82 = scalar_select %p79, %s80, %s81
      %p85 = pneg %p79
      %p86 = scmp.eq.s32.totalorder %s20, 1
      %p87 = por %p85, %p86
      %p88 = scmp.ne.s32.totalorder %s80, %s83
      %p89 = scmp.eq.s32.totalorder %s20, 0
      %p90 = por %p88, %p89
      %p91 = scmp.ne.s32.totalorder %s80, %s83
      %p92 = scmp.eq.s32.totalorder %s25, 1
      %p93 = por %p91, %p92
      %p94 = scmp.ne.s32.totalorder %s83, %s84
      %p95 = scmp.eq.s32.totalorder %s25, 0
      %p96 = por %p94, %p95
      %p97 = scmp.ne.s32.totalorder %s83, %s84
      %p98 = scmp.eq.s32.totalorder %s26, 1
      %p99 = por %p97, %p98
      %p101 = scmp.ne.s32.totalorder %s84, %s100
      %p102 = scmp.eq.s32.totalorder %s26, 0
      %p103 = por %p101, %p102
      %s105 = sadd.s32 %s104, 1
      %p108 = scmp.eq.s32.totalorder %s20, 1
      %p109 = scmp.ne.s32.totalorder %s104, %s106
      %p110 = scmp.eq.s32.totalorder %s20, 0
      %p111 = por %p109, %p110
      %p112 = scmp.ne.s32.totalorder %s104, %s106
      %p113 = scmp.eq.s32.totalorder %s25, 1
      %p114 = por %p112, %p113
      %p115 = scmp.ne.s32.totalorder %s106, %s107
      %p116 = scmp.eq.s32.totalorder %s25, 0
      %p117 = por %p115, %p116
      %p118 = scmp.ne.s32.totalorder %s106, %s107
      %p119 = scmp.eq.s32.totalorder %s26, 1
      %p120 = por %p118, %p119
      %p122 = scmp.ne.s32.totalorder %s107, %s121
      %p123 = scmp.eq.s32.totalorder %s26, 0
      %p124 = por %p122, %p123
      %s126 = sadd.s32 %s125, 1
      %p129 = scmp.eq.s32.totalorder %s20, 1
      %p130 = scmp.ne.s32.totalorder %s125, %s127
      %p131 = scmp.eq.s32.totalorder %s20, 0
      %p132 = por %p130, %p131
      %p133 = scmp.ne.s32.totalorder %s125, %s127
      %p134 = scmp.eq.s32.totalorder %s25, 1
      %p135 = por %p133, %p134
      %p136 = scmp.ne.s32.totalorder %s127, %s128
      %p137 = scmp.eq.s32.totalorder %s25, 0
      %p138 = por %p136, %p137
      %p139 = scmp.ne.s32.totalorder %s127, %s128
      %p140 = scmp.eq.s32.totalorder %s26, 1
      %p141 = por %p139, %p140
      %p143 = scmp.ne.s32.totalorder %s128, %s142
      %p144 = scmp.eq.s32.totalorder %s26, 0
      %p145 = por %p143, %p144
      %s147 = sadd.s32 %s146, 1
      %p150 = scmp.eq.s32.totalorder %s20, 1
      %p151 = scmp.ne.s32.totalorder %s146, %s148
      %p152 = scmp.eq.s32.totalorder %s20, 0
      %p153 = por %p151, %p152
      %p154 = scmp.ne.s32.totalorder %s146, %s148
      %p155 = scmp.eq.s32.totalorder %s25, 1
      %p156 = por %p154, %p155
      %p157 = scmp.ne.s32.totalorder %s148, %s149
      %p158 = scmp.eq.s32.totalorder %s25, 0
      %p159 = por %p157, %p158
      %p160 = scmp.ne.s32.totalorder %s148, %s149
      %p161 = scmp.eq.s32.totalorder %s26, 1
      %p162 = por %p160, %p161
      %p164 = scmp.ne.s32.totalorder %s149, %s163
      %p165 = scmp.eq.s32.totalorder %s26, 0
      %p166 = por %p164, %p165
      %s168 = sadd.s32 %s167, 1
      %p171 = scmp.eq.s32.totalorder %s20, 1
      %p172 = scmp.ne.s32.totalorder %s167, %s169
      %p173 = scmp.eq.s32.totalorder %s20, 0
      %p174 = por %p172, %p173
      %p175 = scmp.ne.s32.totalorder %s167, %s169
      %p176 = scmp.eq.s32.totalorder %s25, 1
      %p177 = por %p175, %p176
      %p178 = scmp.ne.s32.totalorder %s169, %s170
      %p179 = scmp.eq.s32.totalorder %s25, 0
      %p180 = por %p178, %p179
      %p181 = scmp.ne.s32.totalorder %s169, %s170
      %p182 = scmp.eq.s32.totalorder %s26, 1
      %p183 = por %p181, %p182
      %p185 = scmp.ne.s32.totalorder %s170, %s184
      %p186 = scmp.eq.s32.totalorder %s26, 0
      %p187 = por %p185, %p186
      %s189 = sadd.s32 %s188, 1
      %p192 = scmp.eq.s32.totalorder %s20, 1
      %p193 = scmp.ne.s32.totalorder %s188, %s190
      %p194 = scmp.eq.s32.totalorder %s20, 0
      %p195 = por %p193, %p194
      %p196 = scmp.ne.s32.totalorder %s188, %s190
      %p197 = scmp.eq.s32.totalorder %s25, 1
      %p198 = por %p196, %p197
      %p199 = scmp.ne.s32.totalorder %s190, %s191
      %p200 = scmp.eq.s32.totalorder %s25, 0
      %p201 = por %p199, %p200
      %p202 = scmp.ne.s32.totalorder %s190, %s191
      %p203 = scmp.eq.s32.totalorder %s26, 1
      %p204 = por %p202, %p203
      %p206 = scmp.ne.s32.totalorder %s191, %s205
      %p207 = scmp.eq.s32.totalorder %s26, 0
      %p208 = por %p206, %p207
      %s210 = sadd.s32 %s209, 1
      %p213 = scmp.eq.s32.totalorder %s20, 1
      %p214 = scmp.ne.s32.totalorder %s209, %s211
      %p215 = scmp.eq.s32.totalorder %s20, 0
      %p216 = por %p214, %p215
      %p217 = scmp.ne.s32.totalorder %s209, %s211
      %p218 = scmp.eq.s32.totalorder %s25, 1
      %p219 = por %p217, %p218
      %p220 = scmp.ne.s32.totalorder %s211, %s212
      %p221 = scmp.eq.s32.totalorder %s25, 0
      %p222 = por %p220, %p221
      %p223 = scmp.ne.s32.totalorder %s211, %s212
      %p224 = scmp.eq.s32.totalorder %s26, 1
      %p225 = por %p223, %p224
      %p227 = scmp.ne.s32.totalorder %s212, %s226
      %p228 = scmp.eq.s32.totalorder %s26, 0
      %p229 = por %p227, %p228
      %s230 = ssub.s32 %s27, %s39
      %s231 = ssub.s32 %s28, %s35
      %s232 = sor.u32 %s230, %s231
      %p233 = scmp.eq.s32.totalorder %s232, 0
      %s235 = sadd.s32 %s234, 1
      %s236 = scalar_select %p233, %s234, %s235
      %p239 = pneg %p233
      %p240 = scmp.eq.s32.totalorder %s20, 1
      %p241 = por %p239, %p240
      %p242 = scmp.ne.s32.totalorder %s234, %s237
      %p243 = scmp.eq.s32.totalorder %s20, 0
      %p244 = por %p242, %p243
      %p245 = scmp.ne.s32.totalorder %s234, %s237
      %p246 = scmp.eq.s32.totalorder %s25, 1
      %p247 = por %p245, %p246
      %p248 = scmp.ne.s32.totalorder %s237, %s238
      %p249 = scmp.eq.s32.totalorder %s25, 0
      %p250 = por %p248, %p249
      %p251 = scmp.ne.s32.totalorder %s237, %s238
      %p252 = scmp.eq.s32.totalorder %s26, 1
      %p253 = por %p251, %p252
      %p255 = scmp.ne.s32.totalorder %s238, %s254
      %p256 = scmp.eq.s32.totalorder %s26, 0
      %p257 = por %p255, %p256
      %p258 = scmp.le.s32.totalorder 1, %s20
      %p259 = scmp.lt.s32.totalorder %s20, 3
      %p260 = pnand %p258, %p259
      %p261 = pneg %p260
      // Predicated region
      $region9: #{decoder_block_forward.1} parent=5 // pred_check
        _
      $region10: #{decoder_block_forward.1} parent=5 // pred_check_branch
        %263 = sbr.rel (%p260) target = $region12
      $region11: #{decoder_block_forward.1} parent=5 // pred_region
        %s264 = ssub.s32 %s20, 1
        // Predicated region
        $region13: #{decoder_block_forward.1} parent=11 // pred_check
          %p265 = pneg %p117
        $region14: #{decoder_block_forward.1} parent=11 // pred_check_branch
          %267 = sbr.rel (%p265) target = $region16
        $region15: #{decoder_block_forward.1} parent=11 // pred_region
          _
        $region16: #{decoder_block_forward.1} parent=11 // pred_fallthru
          _
        // Predicated region
        $region17: #{decoder_block_forward.1} parent=11 // pred_check
          %p268 = pneg %p138
        $region18: #{decoder_block_forward.1} parent=11 // pred_check_branch
          %270 = sbr.rel (%p268) target = $region20
        $region19: #{decoder_block_forward.1} parent=11 // pred_region
          _
        $region20: #{decoder_block_forward.1} parent=11 // pred_fallthru
          _
        // Predicated region
        $region21: #{decoder_block_forward.1} parent=11 // pred_check
          %p271 = pneg %p159
        $region22: #{decoder_block_forward.1} parent=11 // pred_check_branch
          %273 = sbr.rel (%p271) target = $region24
        $region23: #{decoder_block_forward.1} parent=11 // pred_region
          _
        $region24: #{decoder_block_forward.1} parent=11 // pred_fallthru
          _
        // Predicated region
        $region25: #{decoder_block_forward.1} parent=11 // pred_check
          %p274 = pneg %p180
        $region26: #{decoder_block_forward.1} parent=11 // pred_check_branch
          %276 = sbr.rel (%p274) target = $region28
        $region27: #{decoder_block_forward.1} parent=11 // pred_region
          _
        $region28: #{decoder_block_forward.1} parent=11 // pred_fallthru
          _
        // Predicated region
        $region29: #{decoder_block_forward.1} parent=11 // pred_check
          %p277 = pneg %p201
        $region30: #{decoder_block_forward.1} parent=11 // pred_check_branch
          %279 = sbr.rel (%p277) target = $region32
        $region31: #{decoder_block_forward.1} parent=11 // pred_region
          %s281 = ssub.s32 256, 256
          %282 = vsyncadd [#allocation5], %s281
          %s283 = sshll.u32 [#allocation6], 4
          %s284 = int_to_ptr.vmem [resolvable:$true] %s283
          %289 = dma.hbm_to_vmem [thread:$0]  %s6, 256, %s284, [#allocation5], 128, 128, 8
        $region32: #{decoder_block_forward.1} parent=11 // pred_fallthru
          _
        // Predicated region
        $region33: #{decoder_block_forward.1} parent=11 // pred_check
          %p290 = pneg %p222
        $region34: #{decoder_block_forward.1} parent=11 // pred_check_branch
          %292 = sbr.rel (%p290) target = $region36
        $region35: #{decoder_block_forward.1} parent=11 // pred_region
          _
        $region36: #{decoder_block_forward.1} parent=11 // pred_fallthru
          _
      $region12: #{decoder_block_forward.1} parent=5 // pred_fallthru
        _
      %p293 = scmp.lt.s32.totalorder %s20, 2
      // Predicated region
      $region37: #{decoder_block_forward.1} parent=5 // pred_check
        %p294 = pneg %p293
      $region38: #{decoder_block_forward.1} parent=5 // pred_check_branch
        %296 = sbr.rel (%p294) target = $region40
      $region39: #{decoder_block_forward.1} parent=5 // pred_region
        // Predicated region
        $region41: #{decoder_block_forward.1} parent=39 // pred_check
          %p297 = pneg %p54
        $region42: #{decoder_block_forward.1} parent=39 // pred_check_branch
          %299 = sbr.rel (%p297) target = $region44
        $region43: #{decoder_block_forward.1} parent=39 // pred_region
          %s300 = sand.u32 %s44, 1
          %s301 = scalar_lea.sflag [#allocation3], %s300
          %s302 = sand.u32 %s44, 1
          %s303 = smul.addr %s302, 256
          %s304 = scalar_lea.vmem [#allocation2], %s303
          %s305 = smul.u32 16, %s28
          %s307 = ssub.s32 4096, 4096
          %308 = vsyncadd %s301, %s307
          %s309 = smul.addr %s305, 2
          %s310 = smul.addr %s27, 32
          %s311 = sadd.s32 %s309, %s310
          %s312 = smul.addr %s311, 128
          %s313 = scalar_lea.hbm %s0, %s312
          %s314 = sshll.u32 %s304, 4
          %s315 = int_to_ptr.vmem [resolvable:$true] %s314
          %320 = dma.hbm_to_vmem [thread:$0]  %s313, 4096, %s315, %s301, 128, 128, 8
        $region44: #{decoder_block_forward.1} parent=39 // pred_fallthru
          _
        // Predicated region
        $region45: #{decoder_block_forward.1} parent=39 // pred_check
          %p321 = pneg %p90
        $region46: #{decoder_block_forward.1} parent=39 // pred_check_branch
          %323 = sbr.rel (%p321) target = $region48
        $region47: #{decoder_block_forward.1} parent=39 // pred_region
          %s324 = sand.u32 %s20, 1
          %s325 = scalar_lea.sflag [#allocation5], %s324
          %s326 = sand.u32 %s80, 1
          %s327 = smul.addr %s326, 16
          %s328 = scalar_lea.vmem [#allocation4], %s327
          %s329 = sadd.s32 %s28, 1
          %s330 = smul.u32 %s329, 16
          %p331 = scmp.lt.s32.totalorder %s330, 15
          %s332 = scalar_select %p331, %s330, 15
          %s334 = ssub.s32 256, 256
          %335 = vsyncadd %s325, %s334
          %s336 = smul.addr %s332, 2
          %s337 = smul.addr %s27, 32
          %s338 = sadd.s32 %s336, %s337
          %s339 = smul.addr %s338, 128
          %s340 = scalar_lea.hbm %s1, %s339
          %s341 = sshll.u32 %s328, 4
          %s342 = int_to_ptr.vmem [resolvable:$true] %s341
          %347 = dma.hbm_to_vmem [thread:$0]  %s340, 256, %s342, %s325, 128, 128, 8
        $region48: #{decoder_block_forward.1} parent=39 // pred_fallthru
          _
      $region40: #{decoder_block_forward.1} parent=5 // pred_fallthru
        _
      %p348 = scmp.le.s32.totalorder 1, %s20
      %p349 = scmp.lt.s32.totalorder %s20, 3
      %p350 = pnand %p348, %p349
      %p351 = pneg %p350
      // Predicated region
      $region49: #{decoder_block_forward.1} parent=5 // pred_check
        _
      $region50: #{decoder_block_forward.1} parent=5 // pred_check_branch
        %353 = sbr.rel (%p350) target = $region52
      $region51: #{decoder_block_forward.1} parent=5 // pred_region
        %s354 = ssub.s32 %s20, 1
        %s355 = sand.u32 %s47, 1
        %s356 = scalar_lea.sflag [#allocation3], %s355
        %s357 = sand.u32 %s47, 1
        %s358 = smul.addr %s357, 256
        %s359 = scalar_lea.vmem [#allocation2], %s358
        // Predicated region
        $region53: #{decoder_block_forward.1} parent=51 // pred_check
          %p360 = pneg %p60
        $region54: #{decoder_block_forward.1} parent=51 // pred_check_branch
          %362 = sbr.rel (%p360) target = $region56
        $region55: #{decoder_block_forward.1} parent=51 // pred_region
          %363 = dma.done %s356, 4096
        $region56: #{decoder_block_forward.1} parent=51 // pred_fallthru
          _
        %s364 = sand.u32 %s25, 1
        %s365 = scalar_lea.sflag [#allocation5], %s364
        %s366 = sand.u32 %s83, 1
        %s367 = smul.addr %s366, 16
        %s368 = scalar_lea.vmem [#allocation4], %s367
        // Predicated region
        $region57: #{decoder_block_forward.1} parent=51 // pred_check
          %p369 = pneg %p96
        $region58: #{decoder_block_forward.1} parent=51 // pred_check_branch
          %371 = sbr.rel (%p369) target = $region60
        $region59: #{decoder_block_forward.1} parent=51 // pred_region
          %372 = dma.done %s365, 256
        $region60: #{decoder_block_forward.1} parent=51 // pred_fallthru
          _
        // Predicated region
        $region61: #{decoder_block_forward.1} parent=51 // pred_check
          %p373 = pneg %p201
        $region62: #{decoder_block_forward.1} parent=51 // pred_check_branch
          %375 = sbr.rel (%p373) target = $region64
        $region63: #{decoder_block_forward.1} parent=51 // pred_region
          %376 = dma.done [#allocation5], 256
        $region64: #{decoder_block_forward.1} parent=51 // pred_fallthru
          _
        %s377 = sand.u32 %s47, 1
        %s378 = scalar_lea.sflag [#allocation3], %s377
        %s379 = sand.u32 %s47, 1
        %s380 = smul.addr %s379, 256
        %s381 = scalar_lea.vmem [#allocation2], %s380
        %p382 = pneg %p60
        %p383 = pneg %p57
        %s384 = sand.u32 %s25, 1
        %s385 = scalar_lea.sflag [#allocation5], %s384
        %s386 = sand.u32 %s83, 1
        %s387 = smul.addr %s386, 16
        %s388 = scalar_lea.vmem [#allocation4], %s387
        %p389 = pneg %p96
        %p390 = pneg %p93
        %p391 = pneg %p117
        %p392 = pneg %p114
        %p393 = pneg %p138
        %p394 = pneg %p135
        %p395 = pneg %p159
        %p396 = pneg %p156
        %p397 = pneg %p180
        %p398 = pneg %p177
        %p399 = pneg %p201
        %p400 = pneg %p198
        %p401 = pneg %p222
        %p402 = pneg %p219
        %p403 = pneg %p250
        %p404 = pneg %p247
        %s405 = smul.u32 2, %s30
        %p406 = scmp.lt.s32.totalorder %s29, 1
        %s407 = scalar_select %p406, %s29, 1
        %p408 = scmp.lt.s32.totalorder %s405, 1
        %s409 = scalar_select %p408, %s405, 1
        %s410 = smul.addr %s409, 4
        %s411 = smul.addr %s407, 8
        %s412 = sadd.s32 %s410, %s411
        %s413 = smul.addr %s412, 8
        %s414 = scalar_lea.vmem %s8, %s413
        %s415 = smul.u32 16, %s30
        %s416 = sadd.s32 %s30, 1
        %s417 = smul.u32 %s416, 16
        %p418 = scmp.lt.s32.totalorder %s417, 15
        %s419 = scalar_select %p418, %s417, 15
        %s420 = smul.u32 2, %s30
        %p421 = scmp.lt.s32.totalorder %s29, 1
        %s422 = scalar_select %p421, %s29, 1
        %p423 = scmp.lt.s32.totalorder %s420, 1
        %s424 = scalar_select %p423, %s420, 1
        %s425 = smul.addr %s424, 4
        %s426 = smul.addr %s422, 8
        %s427 = sadd.s32 %s425, %s426
        %s428 = smul.addr %s427, 8
        %s429 = scalar_lea.vmem %s8, %s428
        %s430 = smul.u32 2, %s30
        %v431 = vld [vmem:[%s359] sm:$0xff]
        %v432 = vld [vmem:[%s359 + $0x8] sm:$0xff]
        %v433 = vld [vmem:[%s359 + $0x10] sm:$0xff]
        %v434 = vld [vmem:[%s359 + $0x18] sm:$0xff]
        %v435 = vld [vmem:[%s359 + $0x20] sm:$0xff]
        %v436 = vld [vmem:[%s359 + $0x28] sm:$0xff]
        %v437 = vld [vmem:[%s359 + $0x30] sm:$0xff]
        %v438 = vld [vmem:[%s359 + $0x38] sm:$0xff]
        %v439 = vld [vmem:[%s359 + $0x40] sm:$0xff]
        %v440 = vld [vmem:[%s359 + $0x48] sm:$0xff]
        %v441 = vld [vmem:[%s359 + $0x50] sm:$0xff]
        %v442 = vld [vmem:[%s359 + $0x58] sm:$0xff]
        %v443 = vld [vmem:[%s359 + $0x60] sm:$0xff]
        %v444 = vld [vmem:[%s359 + $0x68] sm:$0xff]
        %v445 = vld [vmem:[%s359 + $0x70] sm:$0xff]
        %v446 = vld [vmem:[%s359 + $0x78] sm:$0xff]
        %v447 = vld [vmem:[%s359 + $0x80] sm:$0xff]
        %v448 = vld [vmem:[%s359 + $0x88] sm:$0xff]
        %v449 = vld [vmem:[%s359 + $0x90] sm:$0xff]
        %v450 = vld [vmem:[%s359 + $0x98] sm:$0xff]
        %v451 = vld [vmem:[%s359 + $0xa0] sm:$0xff]
        %v452 = vld [vmem:[%s359 + $0xa8] sm:$0xff]
        %v453 = vld [vmem:[%s359 + $0xb0] sm:$0xff]
        %v454 = vld [vmem:[%s359 + $0xb8] sm:$0xff]
        %v455 = vld [vmem:[%s359 + $0xc0] sm:$0xff]
        %v456 = vld [vmem:[%s359 + $0xc8] sm:$0xff]
        %v457 = vld [vmem:[%s359 + $0xd0] sm:$0xff]
        %v458 = vld [vmem:[%s359 + $0xd8] sm:$0xff]
        %v459 = vld [vmem:[%s359 + $0xe0] sm:$0xff]
        %v460 = vld [vmem:[%s359 + $0xe8] sm:$0xff]
        %v461 = vld [vmem:[%s359 + $0xf0] sm:$0xff]
        %v462 = vld [vmem:[%s359 + $0xf8] sm:$0xff]
        %v463 = vld [vmem:[%s2] sm:$0xff]
        %v464 = vld [vmem:[%s2 + $0x8] sm:$0xff]
        %v465 = vld [vmem:[%s3] sm:$0x1]
        %v467 = vlaneseq
        %v468 = vshrl.u32 %v467, 7
        %v469 = vsub.s32 0, %v468
        %v470 = vrot.slane %v465, %v469
        %vm472 = vcmask 130048
        %v474 = vsel %vm472, %v431, 0
        %v477 = vsel %vm472, %v432, 0
        %v480 = vsel %vm472, %v433, 0
        %v483 = vsel %vm472, %v434, 0
        %v486 = vsel %vm472, %v435, 0
        %v489 = vsel %vm472, %v436, 0
        %v492 = vsel %vm472, %v437, 0
        %v495 = vsel %vm472, %v438, 0
        %v498 = vsel %vm472, %v439, 0
        %v501 = vsel %vm472, %v440, 0
        %v504 = vsel %vm472, %v441, 0
        %v507 = vsel %vm472, %v442, 0
        %v510 = vsel %vm472, %v443, 0
        %v513 = vsel %vm472, %v444, 0
        %v516 = vsel %vm472, %v445, 0
        %v519 = vsel %vm472, %v446, 0
        %v522 = vsel %vm472, %v447, 0
        %v525 = vsel %vm472, %v448, 0
        %v528 = vsel %vm472, %v449, 0
        %v531 = vsel %vm472, %v450, 0
        %v534 = vsel %vm472, %v451, 0
        %v537 = vsel %vm472, %v452, 0
        %v540 = vsel %vm472, %v453, 0
        %v543 = vsel %vm472, %v454, 0
        %v546 = vsel %vm472, %v455, 0
        %v549 = vsel %vm472, %v456, 0
        %v552 = vsel %vm472, %v457, 0
        %v555 = vsel %vm472, %v458, 0
        %v558 = vsel %vm472, %v459, 0
        %v561 = vsel %vm472, %v460, 0
        %v564 = vsel %vm472, %v461, 0
        %v567 = vsel %vm472, %v462, 0
        %569 = vmatprep.subr.mxu0 0.0
        %570 = vmatpush1.msra.mxu0 0.0
        %571 = vmatprep.subr.mxu0 0.0
        %572 = vmatpush1.msra.mxu0 0.0
        %573 = vmatprep.subr.mxu0 0.0
        %574 = vmatpush1.msra.mxu0 0.0
        %575 = vmatprep.subr.mxu0 0.0
        %576 = vmatpush1.msra.mxu0 0.0
        %577 = vmatprep.subr.mxu0 0.0
        %578 = vmatpush1.msra.mxu0 0.0
        %579 = vmatprep.subr.mxu0 0.0
        %580 = vmatpush1.msra.mxu0 0.0
        %581 = vmatprep.subr.mxu0 0.0
        %582 = vmatpush1.msra.mxu0 0.0
        %583 = vmatprep.subr.mxu0 0.0
        %584 = vmatpush1.msra.mxu0 0.0
        %585 = vmatprep.subr.mxu0 0.0
        %586 = vmatpush1.msra.mxu0 0.0
        %587 = vmatprep.subr.mxu0 0.0
        %588 = vmatpush1.msra.mxu0 0.0
        %589 = vmatprep.subr.mxu0 0.0
        %590 = vmatpush1.msra.mxu0 0.0
        %591 = vmatprep.subr.mxu0 0.0
        %592 = vmatpush1.msra.mxu0 0.0
        %593 = vmatprep.subr.mxu0 0.0
        %594 = vmatpush1.msra.mxu0 0.0
        %595 = vmatprep.subr.mxu0 0.0
        %596 = vmatpush1.msra.mxu0 0.0
        %597 = vmatprep.subr.mxu0 0.0
        %598 = vmatpush1.msra.mxu0 %v464
        %599 = vmatprep.subr.mxu0 0.0
        %600 = vmatpush1.msra.mxu0 %v463
        %601 = vmatprep.subr.mxu0 0.0
        %602 = vmatpush2.msra.mxu0 0.0
        %603 = vmatprep.subr.mxu0 0.0
        %604 = vmatpush2.msra.mxu0 0.0
        %605 = vmatprep.subr.mxu0 0.0
        %606 = vmatpush2.msra.mxu0 0.0
        %607 = vmatprep.subr.mxu0 0.0
        %608 = vmatpush2.msra.mxu0 0.0
        %609 = vmatprep.subr.mxu0 0.0
        %610 = vmatpush2.msra.mxu0 0.0
        %611 = vmatprep.subr.mxu0 0.0
        %612 = vmatpush2.msra.mxu0 0.0
        %613 = vmatprep.subr.mxu0 0.0
        %614 = vmatpush2.msra.mxu0 0.0
        %615 = vmatprep.subr.mxu0 0.0
        %616 = vmatpush2.msra.mxu0 0.0
        %617 = vmatprep.subr.mxu0 0.0
        %618 = vmatpush2.msra.mxu0 0.0
        %619 = vmatprep.subr.mxu0 0.0
        %620 = vmatpush2.msra.mxu0 0.0
        %621 = vmatprep.subr.mxu0 0.0
        %622 = vmatpush2.msra.mxu0 0.0
        %623 = vmatprep.subr.mxu0 0.0
        %624 = vmatpush2.msra.mxu0 0.0
        %625 = vmatprep.subr.mxu0 0.0
        %626 = vmatpush2.msra.mxu0 0.0
        %627 = vmatprep.subr.mxu0 0.0
        %628 = vmatpush2.msra.mxu0 0.0
        %629 = vmatprep.subr.mxu0 0.0
        %630 = vmatpush2.msra.mxu0 0.0
        %631 = vmatprep.subr.mxu0 0.0
        %632 = vmatpush2.msra.mxu0 0.0
        %633 = vmatprep.mubr.f32.mxu0 0.0
        %634 = vmatmul.mubr.f32.gmra.mxu0 %v474
        %v635 = vpop.f32.mrf.mxu0
        %v636 = vadd.f32 %v470, %v635
        %v637 = vpop.f32.mrf.mxu0
        %638 = vmatprep.mubr.f32.mxu0 0.0
        %639 = vmatmul.mubr.f32.gmra.mxu0 %v477
        %v640 = vpop.f32.mrf.mxu0
        %v641 = vadd.f32 %v470, %v640
        %v642 = vpop.f32.mrf.mxu0
        %643 = vmatprep.mubr.f32.mxu0 0.0
        %644 = vmatmul.mubr.f32.gmra.mxu0 %v480
        %v645 = vpop.f32.mrf.mxu0
        %v646 = vadd.f32 %v470, %v645
        %v647 = vpop.f32.mrf.mxu0
        %648 = vmatprep.mubr.f32.mxu0 0.0
        %649 = vmatmul.mubr.f32.gmra.mxu0 %v483
        %v650 = vpop.f32.mrf.mxu0
        %v651 = vadd.f32 %v470, %v650
        %v652 = vpop.f32.mrf.mxu0
        %653 = vmatprep.mubr.f32.mxu0 0.0
        %654 = vmatmul.mubr.f32.gmra.mxu0 %v486
        %v655 = vpop.f32.mrf.mxu0
        %v656 = vadd.f32 %v470, %v655
        %v657 = vpop.f32.mrf.mxu0
        %658 = vmatprep.mubr.f32.mxu0 0.0
        %659 = vmatmul.mubr.f32.gmra.mxu0 %v489
        %v660 = vpop.f32.mrf.mxu0
        %v661 = vadd.f32 %v470, %v660
        %v662 = vpop.f32.mrf.mxu0
        %663 = vmatprep.mubr.f32.mxu0 0.0
        %664 = vmatmul.mubr.f32.gmra.mxu0 %v492
        %v665 = vpop.f32.mrf.mxu0
        %v666 = vadd.f32 %v470, %v665
        %v667 = vpop.f32.mrf.mxu0
        %668 = vmatprep.mubr.f32.mxu0 0.0
        %669 = vmatmul.mubr.f32.gmra.mxu0 %v495
        %v670 = vpop.f32.mrf.mxu0
        %v671 = vadd.f32 %v470, %v670
        %v672 = vpop.f32.mrf.mxu0
        %673 = vmatprep.mubr.f32.mxu0 0.0
        %674 = vmatmul.mubr.f32.gmra.mxu0 %v498
        %v675 = vpop.f32.mrf.mxu0
        %v676 = vadd.f32 %v470, %v675
        %v677 = vpop.f32.mrf.mxu0
        %678 = vmatprep.mubr.f32.mxu0 0.0
        %679 = vmatmul.mubr.f32.gmra.mxu0 %v501
        %v680 = vpop.f32.mrf.mxu0
        %v681 = vadd.f32 %v470, %v680
        %v682 = vpop.f32.mrf.mxu0
        %683 = vmatprep.mubr.f32.mxu0 0.0
        %684 = vmatmul.mubr.f32.gmra.mxu0 %v504
        %v685 = vpop.f32.mrf.mxu0
        %v686 = vadd.f32 %v470, %v685
        %v687 = vpop.f32.mrf.mxu0
        %688 = vmatprep.mubr.f32.mxu0 0.0
        %689 = vmatmul.mubr.f32.gmra.mxu0 %v507
        %v690 = vpop.f32.mrf.mxu0
        %v691 = vadd.f32 %v470, %v690
        %v692 = vpop.f32.mrf.mxu0
        %693 = vmatprep.mubr.f32.mxu0 0.0
        %694 = vmatmul.mubr.f32.gmra.mxu0 %v510
        %v695 = vpop.f32.mrf.mxu0
        %v696 = vadd.f32 %v470, %v695
        %v697 = vpop.f32.mrf.mxu0
        %698 = vmatprep.mubr.f32.mxu0 0.0
        %699 = vmatmul.mubr.f32.gmra.mxu0 %v513
        %v700 = vpop.f32.mrf.mxu0
        %v701 = vadd.f32 %v470, %v700
        %v702 = vpop.f32.mrf.mxu0
        %703 = vmatprep.mubr.f32.mxu0 0.0
        %704 = vmatmul.mubr.f32.gmra.mxu0 %v516
        %v705 = vpop.f32.mrf.mxu0
        %v706 = vadd.f32 %v470, %v705
        %v707 = vpop.f32.mrf.mxu0
        %708 = vmatprep.mubr.f32.mxu0 0.0
        %709 = vmatmul.mubr.f32.gmra.mxu0 %v519
        %v710 = vpop.f32.mrf.mxu0
        %v711 = vadd.f32 %v470, %v710
        %v712 = vpop.f32.mrf.mxu0
        %713 = vmatprep.mubr.f32.mxu0 0.0
        %714 = vmatmul.mubr.f32.gmra.mxu0 %v522
        %v715 = vpop.f32.mrf.mxu0
        %v716 = vadd.f32 %v470, %v715
        %v717 = vpop.f32.mrf.mxu0
        %718 = vmatprep.mubr.f32.mxu0 0.0
        %719 = vmatmul.mubr.f32.gmra.mxu0 %v525
        %v720 = vpop.f32.mrf.mxu0
        %v721 = vadd.f32 %v470, %v720
        %v722 = vpop.f32.mrf.mxu0
        %723 = vmatprep.mubr.f32.mxu0 0.0
        %724 = vmatmul.mubr.f32.gmra.mxu0 %v528
        %v725 = vpop.f32.mrf.mxu0
        %v726 = vadd.f32 %v470, %v725
        %v727 = vpop.f32.mrf.mxu0
        %728 = vmatprep.mubr.f32.mxu0 0.0
        %729 = vmatmul.mubr.f32.gmra.mxu0 %v531
        %v730 = vpop.f32.mrf.mxu0
        %v731 = vadd.f32 %v470, %v730
        %v732 = vpop.f32.mrf.mxu0
        %733 = vmatprep.mubr.f32.mxu0 0.0
        %734 = vmatmul.mubr.f32.gmra.mxu0 %v534
        %v735 = vpop.f32.mrf.mxu0
        %v736 = vadd.f32 %v470, %v735
        %v737 = vpop.f32.mrf.mxu0
        %738 = vmatprep.mubr.f32.mxu0 0.0
        %739 = vmatmul.mubr.f32.gmra.mxu0 %v537
        %v740 = vpop.f32.mrf.mxu0
        %v741 = vadd.f32 %v470, %v740
        %v742 = vpop.f32.mrf.mxu0
        %743 = vmatprep.mubr.f32.mxu0 0.0
        %744 = vmatmul.mubr.f32.gmra.mxu0 %v540
        %v745 = vpop.f32.mrf.mxu0
        %v746 = vadd.f32 %v470, %v745
        %v747 = vpop.f32.mrf.mxu0
        %748 = vmatprep.mubr.f32.mxu0 0.0
        %749 = vmatmul.mubr.f32.gmra.mxu0 %v543
        %v750 = vpop.f32.mrf.mxu0
        %v751 = vadd.f32 %v470, %v750
        %v752 = vpop.f32.mrf.mxu0
        %753 = vmatprep.mubr.f32.mxu0 0.0
        %754 = vmatmul.mubr.f32.gmra.mxu0 %v546
        %v755 = vpop.f32.mrf.mxu0
        %v756 = vadd.f32 %v470, %v755
        %v757 = vpop.f32.mrf.mxu0
        %758 = vmatprep.mubr.f32.mxu0 0.0
        %759 = vmatmul.mubr.f32.gmra.mxu0 %v549
        %v760 = vpop.f32.mrf.mxu0
        %v761 = vadd.f32 %v470, %v760
        %v762 = vpop.f32.mrf.mxu0
        %763 = vmatprep.mubr.f32.mxu0 0.0
        %764 = vmatmul.mubr.f32.gmra.mxu0 %v552
        %v765 = vpop.f32.mrf.mxu0
        %v766 = vadd.f32 %v470, %v765
        %v767 = vpop.f32.mrf.mxu0
        %768 = vmatprep.mubr.f32.mxu0 0.0
        %769 = vmatmul.mubr.f32.gmra.mxu0 %v555
        %v770 = vpop.f32.mrf.mxu0
        %v771 = vadd.f32 %v470, %v770
        %v772 = vpop.f32.mrf.mxu0
        %773 = vmatprep.mubr.f32.mxu0 0.0
        %774 = vmatmul.mubr.f32.gmra.mxu0 %v558
        %v775 = vpop.f32.mrf.mxu0
        %v776 = vadd.f32 %v470, %v775
        %v777 = vpop.f32.mrf.mxu0
        %778 = vmatprep.mubr.f32.mxu0 0.0
        %779 = vmatmul.mubr.f32.gmra.mxu0 %v561
        %v780 = vpop.f32.mrf.mxu0
        %v781 = vadd.f32 %v470, %v780
        %v782 = vpop.f32.mrf.mxu0
        %783 = vmatprep.mubr.f32.mxu0 0.0
        %784 = vmatmul.mubr.f32.gmra.mxu0 %v564
        %v785 = vpop.f32.mrf.mxu0
        %v786 = vadd.f32 %v470, %v785
        %v787 = vpop.f32.mrf.mxu0
        %788 = vmatprep.mubr.f32.mxu0 0.0
        %789 = vmatmul.mubr.f32.gmra.mxu0 %v567
        %v790 = vpop.f32.mrf.mxu0
        %v791 = vadd.f32 %v470, %v790
        %v792 = vpop.f32.mrf.mxu0
        %793 = vdwg.mxu0
        %v794 = vmax.f32 %v636, 0.0
        %v795 = vmax.f32 %v641, 0.0
        %v796 = vmax.f32 %v646, 0.0
        %v797 = vmax.f32 %v651, 0.0
        %v798 = vmax.f32 %v656, 0.0
        %v799 = vmax.f32 %v661, 0.0
        %v800 = vmax.f32 %v666, 0.0
        %v801 = vmax.f32 %v671, 0.0
        %v802 = vmax.f32 %v676, 0.0
        %v803 = vmax.f32 %v681, 0.0
        %v804 = vmax.f32 %v686, 0.0
        %v805 = vmax.f32 %v691, 0.0
        %v806 = vmax.f32 %v696, 0.0
        %v807 = vmax.f32 %v701, 0.0
        %v808 = vmax.f32 %v706, 0.0
        %v809 = vmax.f32 %v711, 0.0
        %v810 = vmax.f32 %v716, 0.0
        %v811 = vmax.f32 %v721, 0.0
        %v812 = vmax.f32 %v726, 0.0
        %v813 = vmax.f32 %v731, 0.0
        %v814 = vmax.f32 %v736, 0.0
        %v815 = vmax.f32 %v741, 0.0
        %v816 = vmax.f32 %v746, 0.0
        %v817 = vmax.f32 %v751, 0.0
        %v818 = vmax.f32 %v756, 0.0
        %v819 = vmax.f32 %v761, 0.0
        %v820 = vmax.f32 %v766, 0.0
        %v821 = vmax.f32 %v771, 0.0
        %v822 = vmax.f32 %v776, 0.0
        %v823 = vmax.f32 %v781, 0.0
        %v824 = vmax.f32 %v786, 0.0
        %v825 = vmax.f32 %v791, 0.0
        %v826 = vld [vmem:[%s368] sm:$0xff]
        %v827 = vld [vmem:[%s368 + $0x8] sm:$0xff]
        %v829 = vsel %vm472, %v826, 0
        %v832 = vsel %vm472, %v827, 0
        %834 = vmatprep.subr.mxu0 0.0
        %835 = vmatpush1.msra.mxu0 0.0
        %836 = vmatprep.subr.mxu0 0.0
        %837 = vmatpush1.msra.mxu0 0.0
        %838 = vmatprep.subr.mxu0 0.0
        %839 = vmatpush1.msra.mxu0 0.0
        %840 = vmatprep.subr.mxu0 0.0
        %841 = vmatpush1.msra.mxu0 0.0
        %842 = vmatprep.subr.mxu0 0.0
        %843 = vmatpush1.msra.mxu0 0.0
        %844 = vmatprep.subr.mxu0 0.0
        %845 = vmatpush1.msra.mxu0 0.0
        %846 = vmatprep.subr.mxu0 0.0
        %847 = vmatpush1.msra.mxu0 0.0
        %848 = vmatprep.subr.mxu0 0.0
        %849 = vmatpush1.msra.mxu0 0.0
        %850 = vmatprep.subr.mxu0 0.0
        %851 = vmatpush1.msra.mxu0 0.0
        %852 = vmatprep.subr.mxu0 0.0
        %853 = vmatpush1.msra.mxu0 0.0
        %854 = vmatprep.subr.mxu0 0.0
        %855 = vmatpush1.msra.mxu0 0.0
        %856 = vmatprep.subr.mxu0 0.0
        %857 = vmatpush1.msra.mxu0 0.0
        %858 = vmatprep.subr.mxu0 0.0
        %859 = vmatpush1.msra.mxu0 0.0
        %860 = vmatprep.subr.mxu0 0.0
        %861 = vmatpush1.msra.mxu0 0.0
        %862 = vmatprep.subr.mxu0 0.0
        %863 = vmatpush1.msra.mxu0 %v464
        %864 = vmatprep.subr.mxu0 0.0
        %865 = vmatpush1.msra.mxu0 %v463
        %866 = vmatprep.subr.mxu0 0.0
        %867 = vmatpush2.msra.mxu0 0.0
        %868 = vmatprep.subr.mxu0 0.0
        %869 = vmatpush2.msra.mxu0 0.0
        %870 = vmatprep.subr.mxu0 0.0
        %871 = vmatpush2.msra.mxu0 0.0
        %872 = vmatprep.subr.mxu0 0.0
        %873 = vmatpush2.msra.mxu0 0.0
        %874 = vmatprep.subr.mxu0 0.0
        %875 = vmatpush2.msra.mxu0 0.0
        %876 = vmatprep.subr.mxu0 0.0
        %877 = vmatpush2.msra.mxu0 0.0
        %878 = vmatprep.subr.mxu0 0.0
        %879 = vmatpush2.msra.mxu0 0.0
        %880 = vmatprep.subr.mxu0 0.0
        %881 = vmatpush2.msra.mxu0 0.0
        %882 = vmatprep.subr.mxu0 0.0
        %883 = vmatpush2.msra.mxu0 0.0
        %884 = vmatprep.subr.mxu0 0.0
        %885 = vmatpush2.msra.mxu0 0.0
        %886 = vmatprep.subr.mxu0 0.0
        %887 = vmatpush2.msra.mxu0 0.0
        %888 = vmatprep.subr.mxu0 0.0
        %889 = vmatpush2.msra.mxu0 0.0
        %890 = vmatprep.subr.mxu0 0.0
        %891 = vmatpush2.msra.mxu0 0.0
        %892 = vmatprep.subr.mxu0 0.0
        %893 = vmatpush2.msra.mxu0 0.0
        %894 = vmatprep.subr.mxu0 0.0
        %895 = vmatpush2.msra.mxu0 0.0
        %896 = vmatprep.subr.mxu0 0.0
        %897 = vmatpush2.msra.mxu0 0.0
        %898 = vmatprep.mubr.f32.mxu0 0.0
        %899 = vmatmul.mubr.f32.gmra.mxu0 %v829
        %v900 = vpop.f32.mrf.mxu0
        %v901 = vadd.f32 %v470, %v900
        %v902 = vpop.f32.mrf.mxu0
        %903 = vmatprep.mubr.f32.mxu0 0.0
        %904 = vmatmul.mubr.f32.gmra.mxu0 %v832
        %v905 = vpop.f32.mrf.mxu0
        %v906 = vadd.f32 %v470, %v905
        %v907 = vpop.f32.mrf.mxu0
        %908 = vdwg.mxu0
        %p909 = scmp.lt.s32.totalorder %s30, 0
        %s910 = scalar_select %p909, 1, 0
        %s911 = scvt.s32.f32 %s910
        %v912 = vmax.f32 %v901, 0.0
        %v913 = vmax.f32 %v906, 0.0
        %v914 = vstv %s911
        %v915 = vmul.f32 %v912, %v914
        %v916 = vmul.f32 %v913, %v914
        %949 = vrot.lane.b32.xlu0 %v796, 4
        %v950 = vpop.permute.xlu0 %949
        %951 = vrot.lane.b32.xlu0 %v797, 4
        %v952 = vpop.permute.xlu0 %951
        %953 = vrot.lane.b32.xlu0 %v798, 4
        %v954 = vpop.permute.xlu0 %953
        %955 = vrot.lane.b32.xlu0 %v799, 4
        %v956 = vpop.permute.xlu0 %955
        %957 = vrot.lane.b32.xlu0 %v800, 4
        %v958 = vpop.permute.xlu0 %957
        %959 = vrot.lane.b32.xlu0 %v801, 4
        %v960 = vpop.permute.xlu0 %959
        %961 = vrot.lane.b32.xlu0 %v802, 4
        %v962 = vpop.permute.xlu0 %961
        %963 = vrot.lane.b32.xlu0 %v803, 4
        %v964 = vpop.permute.xlu0 %963
        %965 = vrot.lane.b32.xlu0 %v804, 4
        %v966 = vpop.permute.xlu0 %965
        %967 = vrot.lane.b32.xlu0 %v805, 4
        %v968 = vpop.permute.xlu0 %967
        %969 = vrot.lane.b32.xlu0 %v806, 4
        %v970 = vpop.permute.xlu0 %969
        %971 = vrot.lane.b32.xlu0 %v807, 4
        %v972 = vpop.permute.xlu0 %971
        %973 = vrot.lane.b32.xlu0 %v808, 4
        %v974 = vpop.permute.xlu0 %973
        %975 = vrot.lane.b32.xlu0 %v809, 4
        %v976 = vpop.permute.xlu0 %975
        %977 = vrot.lane.b32.xlu0 %v810, 4
        %v978 = vpop.permute.xlu0 %977
        %979 = vrot.lane.b32.xlu0 %v811, 4
        %v980 = vpop.permute.xlu0 %979
        %981 = vrot.lane.b32.xlu0 %v812, 4
        %v982 = vpop.permute.xlu0 %981
        %983 = vrot.lane.b32.xlu0 %v813, 4
        %v984 = vpop.permute.xlu0 %983
        %985 = vrot.lane.b32.xlu0 %v814, 4
        %v986 = vpop.permute.xlu0 %985
        %987 = vrot.lane.b32.xlu0 %v815, 4
        %v988 = vpop.permute.xlu0 %987
        %989 = vrot.lane.b32.xlu0 %v816, 4
        %v990 = vpop.permute.xlu0 %989
        %991 = vrot.lane.b32.xlu0 %v817, 4
        %v992 = vpop.permute.xlu0 %991
        %993 = vrot.lane.b32.xlu0 %v818, 4
        %v994 = vpop.permute.xlu0 %993
        %995 = vrot.lane.b32.xlu0 %v819, 4
        %v996 = vpop.permute.xlu0 %995
        %997 = vrot.lane.b32.xlu0 %v820, 4
        %v998 = vpop.permute.xlu0 %997
        %999 = vrot.lane.b32.xlu0 %v821, 4
        %v1000 = vpop.permute.xlu0 %999
        %1001 = vrot.lane.b32.xlu0 %v822, 4
        %v1002 = vpop.permute.xlu0 %1001
        %1003 = vrot.lane.b32.xlu0 %v823, 4
        %v1004 = vpop.permute.xlu0 %1003
        %1005 = vrot.lane.b32.xlu0 %v824, 4
        %v1006 = vpop.permute.xlu0 %1005
        %1007 = vrot.lane.b32.xlu0 %v825, 4
        %v1008 = vpop.permute.xlu0 %1007
        %1009 = vrot.lane.b32.xlu0 %v915, 4
        %v1010 = vpop.permute.xlu0 %1009
        %1011 = vrot.lane.b32.xlu0 %v916, 4
        %v1012 = vpop.permute.xlu0 %1011
        %vm1045 = vcmask 31744
        %v1046 = vsel %vm1045, %v794, %v950
        %v1047 = vsel %vm1045, %v795, %v952
        %v1048 = vsel %vm1045, %v796, %v954
        %v1049 = vsel %vm1045, %v797, %v956
        %v1050 = vsel %vm1045, %v798, %v958
        %v1051 = vsel %vm1045, %v799, %v960
        %v1052 = vsel %vm1045, %v800, %v962
        %v1053 = vsel %vm1045, %v801, %v964
        %v1054 = vsel %vm1045, %v802, %v966
        %v1055 = vsel %vm1045, %v803, %v968
        %v1056 = vsel %vm1045, %v804, %v970
        %v1057 = vsel %vm1045, %v805, %v972
        %v1058 = vsel %vm1045, %v806, %v974
        %v1059 = vsel %vm1045, %v807, %v976
        %v1060 = vsel %vm1045, %v808, %v978
        %v1061 = vsel %vm1045, %v809, %v980
        %v1062 = vsel %vm1045, %v810, %v982
        %v1063 = vsel %vm1045, %v811, %v984
        %v1064 = vsel %vm1045, %v812, %v986
        %v1065 = vsel %vm1045, %v813, %v988
        %v1066 = vsel %vm1045, %v814, %v990
        %v1067 = vsel %vm1045, %v815, %v992
        %v1068 = vsel %vm1045, %v816, %v994
        %v1069 = vsel %vm1045, %v817, %v996
        %v1070 = vsel %vm1045, %v818, %v998
        %v1071 = vsel %vm1045, %v819, %v1000
        %v1072 = vsel %vm1045, %v820, %v1002
        %v1073 = vsel %vm1045, %v821, %v1004
        %v1074 = vsel %vm1045, %v822, %v1006
        %v1075 = vsel %vm1045, %v823, %v1008
        %v1076 = vsel %vm1045, %v824, %v1010
        %v1077 = vsel %vm1045, %v825, %v1012
        %vm1110 = vcmask 1046528
        %v1111 = vrot.slane %v1046, 1
        %v1112 = vrot.slane %v1047, 1
        %v1113 = vsel %vm1110, %v1111, %v1112
        %v1114 = vrot.slane %v1048, 1
        %v1115 = vrot.slane %v1049, 1
        %v1116 = vsel %vm1110, %v1114, %v1115
        %v1117 = vrot.slane %v1050, 1
        %v1118 = vrot.slane %v1051, 1
        %v1119 = vsel %vm1110, %v1117, %v1118
        %v1120 = vrot.slane %v1052, 1
        %v1121 = vrot.slane %v1053, 1
        %v1122 = vsel %vm1110, %v1120, %v1121
        %v1123 = vrot.slane %v1054, 1
        %v1124 = vrot.slane %v1055, 1
        %v1125 = vsel %vm1110, %v1123, %v1124
        %v1126 = vrot.slane %v1056, 1
        %v1127 = vrot.slane %v1057, 1
        %v1128 = vsel %vm1110, %v1126, %v1127
        %v1129 = vrot.slane %v1058, 1
        %v1130 = vrot.slane %v1059, 1
        %v1131 = vsel %vm1110, %v1129, %v1130
        %v1132 = vrot.slane %v1060, 1
        %v1133 = vrot.slane %v1061, 1
        %v1134 = vsel %vm1110, %v1132, %v1133
        %v1135 = vrot.slane %v1062, 1
        %v1136 = vrot.slane %v1063, 1
        %v1137 = vsel %vm1110, %v1135, %v1136
        %v1138 = vrot.slane %v1064, 1
        %v1139 = vrot.slane %v1065, 1
        %v1140 = vsel %vm1110, %v1138, %v1139
        %v1141 = vrot.slane %v1066, 1
        %v1142 = vrot.slane %v1067, 1
        %v1143 = vsel %vm1110, %v1141, %v1142
        %v1144 = vrot.slane %v1068, 1
        %v1145 = vrot.slane %v1069, 1
        %v1146 = vsel %vm1110, %v1144, %v1145
        %v1147 = vrot.slane %v1070, 1
        %v1148 = vrot.slane %v1071, 1
        %v1149 = vsel %vm1110, %v1147, %v1148
        %v1150 = vrot.slane %v1072, 1
        %v1151 = vrot.slane %v1073, 1
        %v1152 = vsel %vm1110, %v1150, %v1151
        %v1153 = vrot.slane %v1074, 1
        %v1154 = vrot.slane %v1075, 1
        %v1155 = vsel %vm1110, %v1153, %v1154
        %v1156 = vrot.slane %v1076, 1
        %v1157 = vrot.slane %v1077, 1
        %v1158 = vsel %vm1110, %v1156, %v1157
        %v1175 = vsel %vm1110, %v1112, 0.0
        %v1176 = vsel %vm1110, %v1115, 0.0
        %v1177 = vsel %vm1110, %v1118, 0.0
        %v1178 = vsel %vm1110, %v1121, 0.0
        %v1179 = vsel %vm1110, %v1124, 0.0
        %v1180 = vsel %vm1110, %v1127, 0.0
        %v1181 = vsel %vm1110, %v1130, 0.0
        %v1182 = vsel %vm1110, %v1133, 0.0
        %v1183 = vsel %vm1110, %v1136, 0.0
        %v1184 = vsel %vm1110, %v1139, 0.0
        %v1185 = vsel %vm1110, %v1142, 0.0
        %v1186 = vsel %vm1110, %v1145, 0.0
        %v1187 = vsel %vm1110, %v1148, 0.0
        %v1188 = vsel %vm1110, %v1151, 0.0
        %v1189 = vsel %vm1110, %v1154, 0.0
        %v1190 = vsel %vm1110, %v1157, 0.0
        %1207 = vrot.lane.b32.xlu0 %v1113, 8
        %v1208 = vpop.permute.xlu0 %1207
        %1209 = vrot.lane.b32.xlu0 %v1175, 8
        %v1210 = vpop.permute.xlu0 %1209
        %1211 = vrot.lane.b32.xlu0 %v1116, 8
        %v1212 = vpop.permute.xlu0 %1211
        %1213 = vrot.lane.b32.xlu0 %v1176, 8
        %v1214 = vpop.permute.xlu0 %1213
        %1215 = vrot.lane.b32.xlu0 %v1119, 8
        %v1216 = vpop.permute.xlu0 %1215
        %1217 = vrot.lane.b32.xlu0 %v1177, 8
        %v1218 = vpop.permute.xlu0 %1217
        %1219 = vrot.lane.b32.xlu0 %v1122, 8
        %v1220 = vpop.permute.xlu0 %1219
        %1221 = vrot.lane.b32.xlu0 %v1178, 8
        %v1222 = vpop.permute.xlu0 %1221
        %1223 = vrot.lane.b32.xlu0 %v1125, 8
        %v1224 = vpop.permute.xlu0 %1223
        %1225 = vrot.lane.b32.xlu0 %v1179, 8
        %v1226 = vpop.permute.xlu0 %1225
        %1227 = vrot.lane.b32.xlu0 %v1128, 8
        %v1228 = vpop.permute.xlu0 %1227
        %1229 = vrot.lane.b32.xlu0 %v1180, 8
        %v1230 = vpop.permute.xlu0 %1229
        %1231 = vrot.lane.b32.xlu0 %v1131, 8
        %v1232 = vpop.permute.xlu0 %1231
        %1233 = vrot.lane.b32.xlu0 %v1181, 8
        %v1234 = vpop.permute.xlu0 %1233
        %1235 = vrot.lane.b32.xlu0 %v1134, 8
        %v1236 = vpop.permute.xlu0 %1235
        %1237 = vrot.lane.b32.xlu0 %v1182, 8
        %v1238 = vpop.permute.xlu0 %1237
        %1239 = vrot.lane.b32.xlu0 %v1137, 8
        %v1240 = vpop.permute.xlu0 %1239
        %1241 = vrot.lane.b32.xlu0 %v1183, 8
        %v1242 = vpop.permute.xlu0 %1241
        %1243 = vrot.lane.b32.xlu0 %v1140, 8
        %v1244 = vpop.permute.xlu0 %1243
        %1245 = vrot.lane.b32.xlu0 %v1184, 8
        %v1246 = vpop.permute.xlu0 %1245
        %1247 = vrot.lane.b32.xlu0 %v1143, 8
        %v1248 = vpop.permute.xlu0 %1247
        %1249 = vrot.lane.b32.xlu0 %v1185, 8
        %v1250 = vpop.permute.xlu0 %1249
        %1251 = vrot.lane.b32.xlu0 %v1146, 8
        %v1252 = vpop.permute.xlu0 %1251
        %1253 = vrot.lane.b32.xlu0 %v1186, 8
        %v1254 = vpop.permute.xlu0 %1253
        %1255 = vrot.lane.b32.xlu0 %v1149, 8
        %v1256 = vpop.permute.xlu0 %1255
        %1257 = vrot.lane.b32.xlu0 %v1187, 8
        %v1258 = vpop.permute.xlu0 %1257
        %1259 = vrot.lane.b32.xlu0 %v1152, 8
        %v1260 = vpop.permute.xlu0 %1259
        %1261 = vrot.lane.b32.xlu0 %v1188, 8
        %v1262 = vpop.permute.xlu0 %1261
        %1263 = vrot.lane.b32.xlu0 %v1155, 8
        %v1264 = vpop.permute.xlu0 %1263
        %1265 = vrot.lane.b32.xlu0 %v1189, 8
        %v1266 = vpop.permute.xlu0 %1265
        %1267 = vrot.lane.b32.xlu0 %v1158, 8
        %v1268 = vpop.permute.xlu0 %1267
        %1269 = vrot.lane.b32.xlu0 %v1190, 8
        %v1270 = vpop.permute.xlu0 %1269
        %vm1303 = vcmask 64512
        %v1304 = vsel %vm1303, %v1046, %v1208
        %v1305 = vsel %vm1303, %v1047, %v1210
        %v1306 = vsel %vm1303, %v1048, %v1212
        %v1307 = vsel %vm1303, %v1049, %v1214
        %v1308 = vsel %vm1303, %v1050, %v1216
        %v1309 = vsel %vm1303, %v1051, %v1218
        %v1310 = vsel %vm1303, %v1052, %v1220
        %v1311 = vsel %vm1303, %v1053, %v1222
        %v1312 = vsel %vm1303, %v1054, %v1224
        %v1313 = vsel %vm1303, %v1055, %v1226
        %v1314 = vsel %vm1303, %v1056, %v1228
        %v1315 = vsel %vm1303, %v1057, %v1230
        %v1316 = vsel %vm1303, %v1058, %v1232
        %v1317 = vsel %vm1303, %v1059, %v1234
        %v1318 = vsel %vm1303, %v1060, %v1236
        %v1319 = vsel %vm1303, %v1061, %v1238
        %v1320 = vsel %vm1303, %v1062, %v1240
        %v1321 = vsel %vm1303, %v1063, %v1242
        %v1322 = vsel %vm1303, %v1064, %v1244
        %v1323 = vsel %vm1303, %v1065, %v1246
        %v1324 = vsel %vm1303, %v1066, %v1248
        %v1325 = vsel %vm1303, %v1067, %v1250
        %v1326 = vsel %vm1303, %v1068, %v1252
        %v1327 = vsel %vm1303, %v1069, %v1254
        %v1328 = vsel %vm1303, %v1070, %v1256
        %v1329 = vsel %vm1303, %v1071, %v1258
        %v1330 = vsel %vm1303, %v1072, %v1260
        %v1331 = vsel %vm1303, %v1073, %v1262
        %v1332 = vsel %vm1303, %v1074, %v1264
        %v1333 = vsel %vm1303, %v1075, %v1266
        %v1334 = vsel %vm1303, %v1076, %v1268
        %v1335 = vsel %vm1303, %v1077, %v1270
        %v1336 = vld [vmem:[%s4] sm:$0xff]
        %v1337 = vld [vmem:[%s4 + $0x8] sm:$0xff]
        %v1338 = vld [vmem:[%s5] sm:$0x1]
        %v1340 = vlaneseq
        %v1341 = vshrl.u32 %v1340, 7
        %v1342 = vsub.s32 0, %v1341
        %v1343 = vrot.slane %v1338, %v1342
        %v1346 = vsel %vm472, %v1304, 0
        %v1349 = vsel %vm472, %v1305, 0
        %v1352 = vsel %vm472, %v1306, 0
        %v1355 = vsel %vm472, %v1307, 0
        %v1358 = vsel %vm472, %v1308, 0
        %v1361 = vsel %vm472, %v1309, 0
        %v1364 = vsel %vm472, %v1310, 0
        %v1367 = vsel %vm472, %v1311, 0
        %v1370 = vsel %vm472, %v1312, 0
        %v1373 = vsel %vm472, %v1313, 0
        %v1376 = vsel %vm472, %v1314, 0
        %v1379 = vsel %vm472, %v1315, 0
        %v1382 = vsel %vm472, %v1316, 0
        %v1385 = vsel %vm472, %v1317, 0
        %v1388 = vsel %vm472, %v1318, 0
        %v1391 = vsel %vm472, %v1319, 0
        %v1394 = vsel %vm472, %v1320, 0
        %v1397 = vsel %vm472, %v1321, 0
        %v1400 = vsel %vm472, %v1322, 0
        %v1403 = vsel %vm472, %v1323, 0
        %v1406 = vsel %vm472, %v1324, 0
        %v1409 = vsel %vm472, %v1325, 0
        %v1412 = vsel %vm472, %v1326, 0
        %v1415 = vsel %vm472, %v1327, 0
        %v1418 = vsel %vm472, %v1328, 0
        %v1421 = vsel %vm472, %v1329, 0
        %v1424 = vsel %vm472, %v1330, 0
        %v1427 = vsel %vm472, %v1331, 0
        %v1430 = vsel %vm472, %v1332, 0
        %v1433 = vsel %vm472, %v1333, 0
        %v1436 = vsel %vm472, %v1334, 0
        %v1439 = vsel %vm472, %v1335, 0
        %1441 = vmatprep.subr.mxu0 0.0
        %1442 = vmatpush1.msra.mxu0 0.0
        %1443 = vmatprep.subr.mxu0 0.0
        %1444 = vmatpush1.msra.mxu0 0.0
        %1445 = vmatprep.subr.mxu0 0.0
        %1446 = vmatpush1.msra.mxu0 0.0
        %1447 = vmatprep.subr.mxu0 0.0
        %1448 = vmatpush1.msra.mxu0 0.0
        %1449 = vmatprep.subr.mxu0 0.0
        %1450 = vmatpush1.msra.mxu0 0.0
        %1451 = vmatprep.subr.mxu0 0.0
        %1452 = vmatpush1.msra.mxu0 0.0
        %1453 = vmatprep.subr.mxu0 0.0
        %1454 = vmatpush1.msra.mxu0 0.0
        %1455 = vmatprep.subr.mxu0 0.0
        %1456 = vmatpush1.msra.mxu0 0.0
        %1457 = vmatprep.subr.mxu0 0.0
        %1458 = vmatpush1.msra.mxu0 0.0
        %1459 = vmatprep.subr.mxu0 0.0
        %1460 = vmatpush1.msra.mxu0 0.0
        %1461 = vmatprep.subr.mxu0 0.0
        %1462 = vmatpush1.msra.mxu0 0.0
        %1463 = vmatprep.subr.mxu0 0.0
        %1464 = vmatpush1.msra.mxu0 0.0
        %1465 = vmatprep.subr.mxu0 0.0
        %1466 = vmatpush1.msra.mxu0 0.0
        %1467 = vmatprep.subr.mxu0 0.0
        %1468 = vmatpush1.msra.mxu0 0.0
        %1469 = vmatprep.subr.mxu0 0.0
        %1470 = vmatpush1.msra.mxu0 %v1337
        %1471 = vmatprep.subr.mxu0 0.0
        %1472 = vmatpush1.msra.mxu0 %v1336
        %1473 = vmatprep.subr.mxu0 0.0
        %1474 = vmatpush2.msra.mxu0 0.0
        %1475 = vmatprep.subr.mxu0 0.0
        %1476 = vmatpush2.msra.mxu0 0.0
        %1477 = vmatprep.subr.mxu0 0.0
        %1478 = vmatpush2.msra.mxu0 0.0
        %1479 = vmatprep.subr.mxu0 0.0
        %1480 = vmatpush2.msra.mxu0 0.0
        %1481 = vmatprep.subr.mxu0 0.0
        %1482 = vmatpush2.msra.mxu0 0.0
        %1483 = vmatprep.subr.mxu0 0.0
        %1484 = vmatpush2.msra.mxu0 0.0
        %1485 = vmatprep.subr.mxu0 0.0
        %1486 = vmatpush2.msra.mxu0 0.0
        %1487 = vmatprep.subr.mxu0 0.0
        %1488 = vmatpush2.msra.mxu0 0.0
        %1489 = vmatprep.subr.mxu0 0.0
        %1490 = vmatpush2.msra.mxu0 0.0
        %1491 = vmatprep.subr.mxu0 0.0
        %1492 = vmatpush2.msra.mxu0 0.0
        %1493 = vmatprep.subr.mxu0 0.0
        %1494 = vmatpush2.msra.mxu0 0.0
        %1495 = vmatprep.subr.mxu0 0.0
        %1496 = vmatpush2.msra.mxu0 0.0
        %1497 = vmatprep.subr.mxu0 0.0
        %1498 = vmatpush2.msra.mxu0 0.0
        %1499 = vmatprep.subr.mxu0 0.0
        %1500 = vmatpush2.msra.mxu0 0.0
        %1501 = vmatprep.subr.mxu0 0.0
        %1502 = vmatpush2.msra.mxu0 0.0
        %1503 = vmatprep.subr.mxu0 0.0
        %1504 = vmatpush2.msra.mxu0 0.0
        %1505 = vmatprep.mubr.f32.mxu0 0.0
        %1506 = vmatmul.mubr.f32.gmra.mxu0 %v1346
        %v1507 = vpop.f32.mrf.mxu0
        %v1508 = vadd.f32 %v1343, %v1507
        %v1509 = vpop.f32.mrf.mxu0
        %1510 = vmatprep.mubr.f32.mxu0 0.0
        %1511 = vmatmul.mubr.f32.gmra.mxu0 %v1349
        %v1512 = vpop.f32.mrf.mxu0
        %v1513 = vadd.f32 %v1343, %v1512
        %v1514 = vpop.f32.mrf.mxu0
        %1515 = vmatprep.mubr.f32.mxu0 0.0
        %1516 = vmatmul.mubr.f32.gmra.mxu0 %v1352
        %v1517 = vpop.f32.mrf.mxu0
        %v1518 = vadd.f32 %v1343, %v1517
        %v1519 = vpop.f32.mrf.mxu0
        %1520 = vmatprep.mubr.f32.mxu0 0.0
        %1521 = vmatmul.mubr.f32.gmra.mxu0 %v1355
        %v1522 = vpop.f32.mrf.mxu0
        %v1523 = vadd.f32 %v1343, %v1522
        %v1524 = vpop.f32.mrf.mxu0
        %1525 = vmatprep.mubr.f32.mxu0 0.0
        %1526 = vmatmul.mubr.f32.gmra.mxu0 %v1358
        %v1527 = vpop.f32.mrf.mxu0
        %v1528 = vadd.f32 %v1343, %v1527
        %v1529 = vpop.f32.mrf.mxu0
        %1530 = vmatprep.mubr.f32.mxu0 0.0
        %1531 = vmatmul.mubr.f32.gmra.mxu0 %v1361
        %v1532 = vpop.f32.mrf.mxu0
        %v1533 = vadd.f32 %v1343, %v1532
        %v1534 = vpop.f32.mrf.mxu0
        %1535 = vmatprep.mubr.f32.mxu0 0.0
        %1536 = vmatmul.mubr.f32.gmra.mxu0 %v1364
        %v1537 = vpop.f32.mrf.mxu0
        %v1538 = vadd.f32 %v1343, %v1537
        %v1539 = vpop.f32.mrf.mxu0
        %1540 = vmatprep.mubr.f32.mxu0 0.0
        %1541 = vmatmul.mubr.f32.gmra.mxu0 %v1367
        %v1542 = vpop.f32.mrf.mxu0
        %v1543 = vadd.f32 %v1343, %v1542
        %v1544 = vpop.f32.mrf.mxu0
        %1545 = vmatprep.mubr.f32.mxu0 0.0
        %1546 = vmatmul.mubr.f32.gmra.mxu0 %v1370
        %v1547 = vpop.f32.mrf.mxu0
        %v1548 = vadd.f32 %v1343, %v1547
        %v1549 = vpop.f32.mrf.mxu0
        %1550 = vmatprep.mubr.f32.mxu0 0.0
        %1551 = vmatmul.mubr.f32.gmra.mxu0 %v1373
        %v1552 = vpop.f32.mrf.mxu0
        %v1553 = vadd.f32 %v1343, %v1552
        %v1554 = vpop.f32.mrf.mxu0
        %1555 = vmatprep.mubr.f32.mxu0 0.0
        %1556 = vmatmul.mubr.f32.gmra.mxu0 %v1376
        %v1557 = vpop.f32.mrf.mxu0
        %v1558 = vadd.f32 %v1343, %v1557
        %v1559 = vpop.f32.mrf.mxu0
        %1560 = vmatprep.mubr.f32.mxu0 0.0
        %1561 = vmatmul.mubr.f32.gmra.mxu0 %v1379
        %v1562 = vpop.f32.mrf.mxu0
        %v1563 = vadd.f32 %v1343, %v1562
        %v1564 = vpop.f32.mrf.mxu0
        %1565 = vmatprep.mubr.f32.mxu0 0.0
        %1566 = vmatmul.mubr.f32.gmra.mxu0 %v1382
        %v1567 = vpop.f32.mrf.mxu0
        %v1568 = vadd.f32 %v1343, %v1567
        %v1569 = vpop.f32.mrf.mxu0
        %1570 = vmatprep.mubr.f32.mxu0 0.0
        %1571 = vmatmul.mubr.f32.gmra.mxu0 %v1385
        %v1572 = vpop.f32.mrf.mxu0
        %v1573 = vadd.f32 %v1343, %v1572
        %v1574 = vpop.f32.mrf.mxu0
        %1575 = vmatprep.mubr.f32.mxu0 0.0
        %1576 = vmatmul.mubr.f32.gmra.mxu0 %v1388
        %v1577 = vpop.f32.mrf.mxu0
        %v1578 = vadd.f32 %v1343, %v1577
        %v1579 = vpop.f32.mrf.mxu0
        %1580 = vmatprep.mubr.f32.mxu0 0.0
        %1581 = vmatmul.mubr.f32.gmra.mxu0 %v1391
        %v1582 = vpop.f32.mrf.mxu0
        %v1583 = vadd.f32 %v1343, %v1582
        %v1584 = vpop.f32.mrf.mxu0
        %1585 = vmatprep.mubr.f32.mxu0 0.0
        %1586 = vmatmul.mubr.f32.gmra.mxu0 %v1394
        %v1587 = vpop.f32.mrf.mxu0
        %v1588 = vadd.f32 %v1343, %v1587
        %v1589 = vpop.f32.mrf.mxu0
        %1590 = vmatprep.mubr.f32.mxu0 0.0
        %1591 = vmatmul.mubr.f32.gmra.mxu0 %v1397
        %v1592 = vpop.f32.mrf.mxu0
        %v1593 = vadd.f32 %v1343, %v1592
        %v1594 = vpop.f32.mrf.mxu0
        %1595 = vmatprep.mubr.f32.mxu0 0.0
        %1596 = vmatmul.mubr.f32.gmra.mxu0 %v1400
        %v1597 = vpop.f32.mrf.mxu0
        %v1598 = vadd.f32 %v1343, %v1597
        %v1599 = vpop.f32.mrf.mxu0
        %1600 = vmatprep.mubr.f32.mxu0 0.0
        %1601 = vmatmul.mubr.f32.gmra.mxu0 %v1403
        %v1602 = vpop.f32.mrf.mxu0
        %v1603 = vadd.f32 %v1343, %v1602
        %v1604 = vpop.f32.mrf.mxu0
        %1605 = vmatprep.mubr.f32.mxu0 0.0
        %1606 = vmatmul.mubr.f32.gmra.mxu0 %v1406
        %v1607 = vpop.f32.mrf.mxu0
        %v1608 = vadd.f32 %v1343, %v1607
        %v1609 = vpop.f32.mrf.mxu0
        %1610 = vmatprep.mubr.f32.mxu0 0.0
        %1611 = vmatmul.mubr.f32.gmra.mxu0 %v1409
        %v1612 = vpop.f32.mrf.mxu0
        %v1613 = vadd.f32 %v1343, %v1612
        %v1614 = vpop.f32.mrf.mxu0
        %1615 = vmatprep.mubr.f32.mxu0 0.0
        %1616 = vmatmul.mubr.f32.gmra.mxu0 %v1412
        %v1617 = vpop.f32.mrf.mxu0
        %v1618 = vadd.f32 %v1343, %v1617
        %v1619 = vpop.f32.mrf.mxu0
        %1620 = vmatprep.mubr.f32.mxu0 0.0
        %1621 = vmatmul.mubr.f32.gmra.mxu0 %v1415
        %v1622 = vpop.f32.mrf.mxu0
        %v1623 = vadd.f32 %v1343, %v1622
        %v1624 = vpop.f32.mrf.mxu0
        %1625 = vmatprep.mubr.f32.mxu0 0.0
        %1626 = vmatmul.mubr.f32.gmra.mxu0 %v1418
        %v1627 = vpop.f32.mrf.mxu0
        %v1628 = vadd.f32 %v1343, %v1627
        %v1629 = vpop.f32.mrf.mxu0
        %1630 = vmatprep.mubr.f32.mxu0 0.0
        %1631 = vmatmul.mubr.f32.gmra.mxu0 %v1421
        %v1632 = vpop.f32.mrf.mxu0
        %v1633 = vadd.f32 %v1343, %v1632
        %v1634 = vpop.f32.mrf.mxu0
        %1635 = vmatprep.mubr.f32.mxu0 0.0
        %1636 = vmatmul.mubr.f32.gmra.mxu0 %v1424
        %v1637 = vpop.f32.mrf.mxu0
        %v1638 = vadd.f32 %v1343, %v1637
        %v1639 = vpop.f32.mrf.mxu0
        %1640 = vmatprep.mubr.f32.mxu0 0.0
        %1641 = vmatmul.mubr.f32.gmra.mxu0 %v1427
        %v1642 = vpop.f32.mrf.mxu0
        %v1643 = vadd.f32 %v1343, %v1642
        %v1644 = vpop.f32.mrf.mxu0
        %1645 = vmatprep.mubr.f32.mxu0 0.0
        %1646 = vmatmul.mubr.f32.gmra.mxu0 %v1430
        %v1647 = vpop.f32.mrf.mxu0
        %v1648 = vadd.f32 %v1343, %v1647
        %v1649 = vpop.f32.mrf.mxu0
        %1650 = vmatprep.mubr.f32.mxu0 0.0
        %1651 = vmatmul.mubr.f32.gmra.mxu0 %v1433
        %v1652 = vpop.f32.mrf.mxu0
        %v1653 = vadd.f32 %v1343, %v1652
        %v1654 = vpop.f32.mrf.mxu0
        %1655 = vmatprep.mubr.f32.mxu0 0.0
        %1656 = vmatmul.mubr.f32.gmra.mxu0 %v1436
        %v1657 = vpop.f32.mrf.mxu0
        %v1658 = vadd.f32 %v1343, %v1657
        %v1659 = vpop.f32.mrf.mxu0
        %1660 = vmatprep.mubr.f32.mxu0 0.0
        %1661 = vmatmul.mubr.f32.gmra.mxu0 %v1439
        %v1662 = vpop.f32.mrf.mxu0
        %v1663 = vadd.f32 %v1343, %v1662
        %v1664 = vpop.f32.mrf.mxu0
        %1665 = vdwg.mxu0
        %v1666 = vmax.f32 %v1508, 0.0
        %v1667 = vmax.f32 %v1513, 0.0
        %v1668 = vmax.f32 %v1518, 0.0
        %v1669 = vmax.f32 %v1523, 0.0
        %v1670 = vmax.f32 %v1528, 0.0
        %v1671 = vmax.f32 %v1533, 0.0
        %v1672 = vmax.f32 %v1538, 0.0
        %v1673 = vmax.f32 %v1543, 0.0
        %v1674 = vmax.f32 %v1548, 0.0
        %v1675 = vmax.f32 %v1553, 0.0
        %v1676 = vmax.f32 %v1558, 0.0
        %v1677 = vmax.f32 %v1563, 0.0
        %v1678 = vmax.f32 %v1568, 0.0
        %v1679 = vmax.f32 %v1573, 0.0
        %v1680 = vmax.f32 %v1578, 0.0
        %v1681 = vmax.f32 %v1583, 0.0
        %v1682 = vmax.f32 %v1588, 0.0
        %v1683 = vmax.f32 %v1593, 0.0
        %v1684 = vmax.f32 %v1598, 0.0
        %v1685 = vmax.f32 %v1603, 0.0
        %v1686 = vmax.f32 %v1608, 0.0
        %v1687 = vmax.f32 %v1613, 0.0
        %v1688 = vmax.f32 %v1618, 0.0
        %v1689 = vmax.f32 %v1623, 0.0
        %v1690 = vmax.f32 %v1628, 0.0
        %v1691 = vmax.f32 %v1633, 0.0
        %v1692 = vmax.f32 %v1638, 0.0
        %v1693 = vmax.f32 %v1643, 0.0
        %v1694 = vmax.f32 %v1648, 0.0
        %v1695 = vmax.f32 %v1653, 0.0
        %v1696 = vmax.f32 %v1658, 0.0
        %v1697 = vmax.f32 %v1663, 0.0
        %v1698 = vld [vmem:[#allocation6] sm:$0xff]
        %v1699 = vld [vmem:[#allocation6 + $0x8] sm:$0xff]
        %v1700 = vld [vmem:[%s7] sm:$0x1]
        %v1702 = vlaneseq
        %v1703 = vshrl.u32 %v1702, 7
        %v1704 = vsub.s32 0, %v1703
        %v1705 = vrot.slane %v1700, %v1704
        %v1708 = vsel %vm472, %v1666, 0
        %v1711 = vsel %vm472, %v1667, 0
        %v1714 = vsel %vm472, %v1668, 0
        %v1717 = vsel %vm472, %v1669, 0
        %v1720 = vsel %vm472, %v1670, 0
        %v1723 = vsel %vm472, %v1671, 0
        %v1726 = vsel %vm472, %v1672, 0
        %v1729 = vsel %vm472, %v1673, 0
        %v1732 = vsel %vm472, %v1674, 0
        %v1735 = vsel %vm472, %v1675, 0
        %v1738 = vsel %vm472, %v1676, 0
        %v1741 = vsel %vm472, %v1677, 0
        %v1744 = vsel %vm472, %v1678, 0
        %v1747 = vsel %vm472, %v1679, 0
        %v1750 = vsel %vm472, %v1680, 0
        %v1753 = vsel %vm472, %v1681, 0
        %v1756 = vsel %vm472, %v1682, 0
        %v1759 = vsel %vm472, %v1683, 0
        %v1762 = vsel %vm472, %v1684, 0
        %v1765 = vsel %vm472, %v1685, 0
        %v1768 = vsel %vm472, %v1686, 0
        %v1771 = vsel %vm472, %v1687, 0
        %v1774 = vsel %vm472, %v1688, 0
        %v1777 = vsel %vm472, %v1689, 0
        %v1780 = vsel %vm472, %v1690, 0
        %v1783 = vsel %vm472, %v1691, 0
        %v1786 = vsel %vm472, %v1692, 0
        %v1789 = vsel %vm472, %v1693, 0
        %v1792 = vsel %vm472, %v1694, 0
        %v1795 = vsel %vm472, %v1695, 0
        %v1798 = vsel %vm472, %v1696, 0
        %v1801 = vsel %vm472, %v1697, 0
        %1803 = vmatprep.subr.mxu0 0.0
        %1804 = vmatpush1.msra.mxu0 0.0
        %1805 = vmatprep.subr.mxu0 0.0
        %1806 = vmatpush1.msra.mxu0 0.0
        %1807 = vmatprep.subr.mxu0 0.0
        %1808 = vmatpush1.msra.mxu0 0.0
        %1809 = vmatprep.subr.mxu0 0.0
        %1810 = vmatpush1.msra.mxu0 0.0
        %1811 = vmatprep.subr.mxu0 0.0
        %1812 = vmatpush1.msra.mxu0 0.0
        %1813 = vmatprep.subr.mxu0 0.0
        %1814 = vmatpush1.msra.mxu0 0.0
        %1815 = vmatprep.subr.mxu0 0.0
        %1816 = vmatpush1.msra.mxu0 0.0
        %1817 = vmatprep.subr.mxu0 0.0
        %1818 = vmatpush1.msra.mxu0 0.0
        %1819 = vmatprep.subr.mxu0 0.0
        %1820 = vmatpush1.msra.mxu0 0.0
        %1821 = vmatprep.subr.mxu0 0.0
        %1822 = vmatpush1.msra.mxu0 0.0
        %1823 = vmatprep.subr.mxu0 0.0
        %1824 = vmatpush1.msra.mxu0 0.0
        %1825 = vmatprep.subr.mxu0 0.0
        %1826 = vmatpush1.msra.mxu0 0.0
        %1827 = vmatprep.subr.mxu0 0.0
        %1828 = vmatpush1.msra.mxu0 0.0
        %1829 = vmatprep.subr.mxu0 0.0
        %1830 = vmatpush1.msra.mxu0 0.0
        %1831 = vmatprep.subr.mxu0 0.0
        %1832 = vmatpush1.msra.mxu0 %v1699
        %1833 = vmatprep.subr.mxu0 0.0
        %1834 = vmatpush1.msra.mxu0 %v1698
        %1835 = vmatprep.subr.mxu0 0.0
        %1836 = vmatpush2.msra.mxu0 0.0
        %1837 = vmatprep.subr.mxu0 0.0
        %1838 = vmatpush2.msra.mxu0 0.0
        %1839 = vmatprep.subr.mxu0 0.0
        %1840 = vmatpush2.msra.mxu0 0.0
        %1841 = vmatprep.subr.mxu0 0.0
        %1842 = vmatpush2.msra.mxu0 0.0
        %1843 = vmatprep.subr.mxu0 0.0
        %1844 = vmatpush2.msra.mxu0 0.0
        %1845 = vmatprep.subr.mxu0 0.0
        %1846 = vmatpush2.msra.mxu0 0.0
        %1847 = vmatprep.subr.mxu0 0.0
        %1848 = vmatpush2.msra.mxu0 0.0
        %1849 = vmatprep.subr.mxu0 0.0
        %1850 = vmatpush2.msra.mxu0 0.0
        %1851 = vmatprep.subr.mxu0 0.0
        %1852 = vmatpush2.msra.mxu0 0.0
        %1853 = vmatprep.subr.mxu0 0.0
        %1854 = vmatpush2.msra.mxu0 0.0
        %1855 = vmatprep.subr.mxu0 0.0
        %1856 = vmatpush2.msra.mxu0 0.0
        %1857 = vmatprep.subr.mxu0 0.0
        %1858 = vmatpush2.msra.mxu0 0.0
        %1859 = vmatprep.subr.mxu0 0.0
        %1860 = vmatpush2.msra.mxu0 0.0
        %1861 = vmatprep.subr.mxu0 0.0
        %1862 = vmatpush2.msra.mxu0 0.0
        %1863 = vmatprep.subr.mxu0 0.0
        %1864 = vmatpush2.msra.mxu0 0.0
        %1865 = vmatprep.subr.mxu0 0.0
        %1866 = vmatpush2.msra.mxu0 0.0
        %1867 = vmatprep.mubr.f32.mxu0 0.0
        %1868 = vmatmul.mubr.f32.gmra.mxu0 %v1708
        %v1869 = vpop.f32.mrf.mxu0
        %v1870 = vadd.f32 %v1705, %v1869
        %v1871 = vpop.f32.mrf.mxu0
        %1872 = vmatprep.mubr.f32.mxu0 0.0
        %1873 = vmatmul.mubr.f32.gmra.mxu0 %v1711
        %v1874 = vpop.f32.mrf.mxu0
        %v1875 = vadd.f32 %v1705, %v1874
        %v1876 = vpop.f32.mrf.mxu0
        %1877 = vmatprep.mubr.f32.mxu0 0.0
        %1878 = vmatmul.mubr.f32.gmra.mxu0 %v1714
        %v1879 = vpop.f32.mrf.mxu0
        %v1880 = vadd.f32 %v1705, %v1879
        %v1881 = vpop.f32.mrf.mxu0
        %1882 = vmatprep.mubr.f32.mxu0 0.0
        %1883 = vmatmul.mubr.f32.gmra.mxu0 %v1717
        %v1884 = vpop.f32.mrf.mxu0
        %v1885 = vadd.f32 %v1705, %v1884
        %v1886 = vpop.f32.mrf.mxu0
        %1887 = vmatprep.mubr.f32.mxu0 0.0
        %1888 = vmatmul.mubr.f32.gmra.mxu0 %v1720
        %v1889 = vpop.f32.mrf.mxu0
        %v1890 = vadd.f32 %v1705, %v1889
        %v1891 = vpop.f32.mrf.mxu0
        %1892 = vmatprep.mubr.f32.mxu0 0.0
        %1893 = vmatmul.mubr.f32.gmra.mxu0 %v1723
        %v1894 = vpop.f32.mrf.mxu0
        %v1895 = vadd.f32 %v1705, %v1894
        %v1896 = vpop.f32.mrf.mxu0
        %1897 = vmatprep.mubr.f32.mxu0 0.0
        %1898 = vmatmul.mubr.f32.gmra.mxu0 %v1726
        %v1899 = vpop.f32.mrf.mxu0
        %v1900 = vadd.f32 %v1705, %v1899
        %v1901 = vpop.f32.mrf.mxu0
        %1902 = vmatprep.mubr.f32.mxu0 0.0
        %1903 = vmatmul.mubr.f32.gmra.mxu0 %v1729
        %v1904 = vpop.f32.mrf.mxu0
        %v1905 = vadd.f32 %v1705, %v1904
        %v1906 = vpop.f32.mrf.mxu0
        %1907 = vmatprep.mubr.f32.mxu0 0.0
        %1908 = vmatmul.mubr.f32.gmra.mxu0 %v1732
        %v1909 = vpop.f32.mrf.mxu0
        %v1910 = vadd.f32 %v1705, %v1909
        %v1911 = vpop.f32.mrf.mxu0
        %1912 = vmatprep.mubr.f32.mxu0 0.0
        %1913 = vmatmul.mubr.f32.gmra.mxu0 %v1735
        %v1914 = vpop.f32.mrf.mxu0
        %v1915 = vadd.f32 %v1705, %v1914
        %v1916 = vpop.f32.mrf.mxu0
        %1917 = vmatprep.mubr.f32.mxu0 0.0
        %1918 = vmatmul.mubr.f32.gmra.mxu0 %v1738
        %v1919 = vpop.f32.mrf.mxu0
        %v1920 = vadd.f32 %v1705, %v1919
        %v1921 = vpop.f32.mrf.mxu0
        %1922 = vmatprep.mubr.f32.mxu0 0.0
        %1923 = vmatmul.mubr.f32.gmra.mxu0 %v1741
        %v1924 = vpop.f32.mrf.mxu0
        %v1925 = vadd.f32 %v1705, %v1924
        %v1926 = vpop.f32.mrf.mxu0
        %1927 = vmatprep.mubr.f32.mxu0 0.0
        %1928 = vmatmul.mubr.f32.gmra.mxu0 %v1744
        %v1929 = vpop.f32.mrf.mxu0
        %v1930 = vadd.f32 %v1705, %v1929
        %v1931 = vpop.f32.mrf.mxu0
        %1932 = vmatprep.mubr.f32.mxu0 0.0
        %1933 = vmatmul.mubr.f32.gmra.mxu0 %v1747
        %v1934 = vpop.f32.mrf.mxu0
        %v1935 = vadd.f32 %v1705, %v1934
        %v1936 = vpop.f32.mrf.mxu0
        %1937 = vmatprep.mubr.f32.mxu0 0.0
        %1938 = vmatmul.mubr.f32.gmra.mxu0 %v1750
        %v1939 = vpop.f32.mrf.mxu0
        %v1940 = vadd.f32 %v1705, %v1939
        %v1941 = vpop.f32.mrf.mxu0
        %1942 = vmatprep.mubr.f32.mxu0 0.0
        %1943 = vmatmul.mubr.f32.gmra.mxu0 %v1753
        %v1944 = vpop.f32.mrf.mxu0
        %v1945 = vadd.f32 %v1705, %v1944
        %v1946 = vpop.f32.mrf.mxu0
        %1947 = vmatprep.mubr.f32.mxu0 0.0
        %1948 = vmatmul.mubr.f32.gmra.mxu0 %v1756
        %v1949 = vpop.f32.mrf.mxu0
        %v1950 = vadd.f32 %v1705, %v1949
        %v1951 = vpop.f32.mrf.mxu0
        %1952 = vmatprep.mubr.f32.mxu0 0.0
        %1953 = vmatmul.mubr.f32.gmra.mxu0 %v1759
        %v1954 = vpop.f32.mrf.mxu0
        %v1955 = vadd.f32 %v1705, %v1954
        %v1956 = vpop.f32.mrf.mxu0
        %1957 = vmatprep.mubr.f32.mxu0 0.0
        %1958 = vmatmul.mubr.f32.gmra.mxu0 %v1762
        %v1959 = vpop.f32.mrf.mxu0
        %v1960 = vadd.f32 %v1705, %v1959
        %v1961 = vpop.f32.mrf.mxu0
        %1962 = vmatprep.mubr.f32.mxu0 0.0
        %1963 = vmatmul.mubr.f32.gmra.mxu0 %v1765
        %v1964 = vpop.f32.mrf.mxu0
        %v1965 = vadd.f32 %v1705, %v1964
        %v1966 = vpop.f32.mrf.mxu0
        %1967 = vmatprep.mubr.f32.mxu0 0.0
        %1968 = vmatmul.mubr.f32.gmra.mxu0 %v1768
        %v1969 = vpop.f32.mrf.mxu0
        %v1970 = vadd.f32 %v1705, %v1969
        %v1971 = vpop.f32.mrf.mxu0
        %1972 = vmatprep.mubr.f32.mxu0 0.0
        %1973 = vmatmul.mubr.f32.gmra.mxu0 %v1771
        %v1974 = vpop.f32.mrf.mxu0
        %v1975 = vadd.f32 %v1705, %v1974
        %v1976 = vpop.f32.mrf.mxu0
        %1977 = vmatprep.mubr.f32.mxu0 0.0
        %1978 = vmatmul.mubr.f32.gmra.mxu0 %v1774
        %v1979 = vpop.f32.mrf.mxu0
        %v1980 = vadd.f32 %v1705, %v1979
        %v1981 = vpop.f32.mrf.mxu0
        %1982 = vmatprep.mubr.f32.mxu0 0.0
        %1983 = vmatmul.mubr.f32.gmra.mxu0 %v1777
        %v1984 = vpop.f32.mrf.mxu0
        %v1985 = vadd.f32 %v1705, %v1984
        %v1986 = vpop.f32.mrf.mxu0
        %1987 = vmatprep.mubr.f32.mxu0 0.0
        %1988 = vmatmul.mubr.f32.gmra.mxu0 %v1780
        %v1989 = vpop.f32.mrf.mxu0
        %v1990 = vadd.f32 %v1705, %v1989
        %v1991 = vpop.f32.mrf.mxu0
        %1992 = vmatprep.mubr.f32.mxu0 0.0
        %1993 = vmatmul.mubr.f32.gmra.mxu0 %v1783
        %v1994 = vpop.f32.mrf.mxu0
        %v1995 = vadd.f32 %v1705, %v1994
        %v1996 = vpop.f32.mrf.mxu0
        %1997 = vmatprep.mubr.f32.mxu0 0.0
        %1998 = vmatmul.mubr.f32.gmra.mxu0 %v1786
        %v1999 = vpop.f32.mrf.mxu0
        %v2000 = vadd.f32 %v1705, %v1999
        %v2001 = vpop.f32.mrf.mxu0
        %2002 = vmatprep.mubr.f32.mxu0 0.0
        %2003 = vmatmul.mubr.f32.gmra.mxu0 %v1789
        %v2004 = vpop.f32.mrf.mxu0
        %v2005 = vadd.f32 %v1705, %v2004
        %v2006 = vpop.f32.mrf.mxu0
        %2007 = vmatprep.mubr.f32.mxu0 0.0
        %2008 = vmatmul.mubr.f32.gmra.mxu0 %v1792
        %v2009 = vpop.f32.mrf.mxu0
        %v2010 = vadd.f32 %v1705, %v2009
        %v2011 = vpop.f32.mrf.mxu0
        %2012 = vmatprep.mubr.f32.mxu0 0.0
        %2013 = vmatmul.mubr.f32.gmra.mxu0 %v1795
        %v2014 = vpop.f32.mrf.mxu0
        %v2015 = vadd.f32 %v1705, %v2014
        %v2016 = vpop.f32.mrf.mxu0
        %2017 = vmatprep.mubr.f32.mxu0 0.0
        %2018 = vmatmul.mubr.f32.gmra.mxu0 %v1798
        %v2019 = vpop.f32.mrf.mxu0
        %v2020 = vadd.f32 %v1705, %v2019
        %v2021 = vpop.f32.mrf.mxu0
        %2022 = vmatprep.mubr.f32.mxu0 0.0
        %2023 = vmatmul.mubr.f32.gmra.mxu0 %v1801
        %v2024 = vpop.f32.mrf.mxu0
        %v2025 = vadd.f32 %v1705, %v2024
        %v2026 = vpop.f32.mrf.mxu0
        %2027 = vdwg.mxu0
        %v2028 = vmax.f32 %v1870, 0.0
        %v2029 = vmax.f32 %v1875, 0.0
        %v2030 = vmax.f32 %v1880, 0.0
        %v2031 = vmax.f32 %v1885, 0.0
        %v2032 = vmax.f32 %v1890, 0.0
        %v2033 = vmax.f32 %v1895, 0.0
        %v2034 = vmax.f32 %v1900, 0.0
        %v2035 = vmax.f32 %v1905, 0.0
        %v2036 = vmax.f32 %v1910, 0.0
        %v2037 = vmax.f32 %v1915, 0.0
        %v2038 = vmax.f32 %v1920, 0.0
        %v2039 = vmax.f32 %v1925, 0.0
        %v2040 = vmax.f32 %v1930, 0.0
        %v2041 = vmax.f32 %v1935, 0.0
        %v2042 = vmax.f32 %v1940, 0.0
        %v2043 = vmax.f32 %v1945, 0.0
        %v2044 = vmax.f32 %v1950, 0.0
        %v2045 = vmax.f32 %v1955, 0.0
        %v2046 = vmax.f32 %v1960, 0.0
        %v2047 = vmax.f32 %v1965, 0.0
        %v2048 = vmax.f32 %v1970, 0.0
        %v2049 = vmax.f32 %v1975, 0.0
        %v2050 = vmax.f32 %v1980, 0.0
        %v2051 = vmax.f32 %v1985, 0.0
        %v2052 = vmax.f32 %v1990, 0.0
        %v2053 = vmax.f32 %v1995, 0.0
        %v2054 = vmax.f32 %v2000, 0.0
        %v2055 = vmax.f32 %v2005, 0.0
        %v2056 = vmax.f32 %v2010, 0.0
        %v2057 = vmax.f32 %v2015, 0.0
        %v2058 = vmax.f32 %v2020, 0.0
        %v2059 = vmax.f32 %v2025, 0.0
        %v2060 = vcombine.low %v2028, %v2032
        %v2061 = vcombine.high %v2028, %v2032
        %v2063 = vunpack.c.l.s4 1983009808
        %v2064 = vunpack.c.0.s8 %v2063
        %v2065 = vlaneseq
        %v2066 = vshrl.u32 %v2065, 7
        %v2067 = vsub.s32 %v2064, %v2066
        %v2068 = vrot.slane %v2060, %v2067
        %v2070 = vunpack.c.l.s4 1983009808
        %v2071 = vunpack.c.0.s8 %v2070
        %v2072 = vlaneseq
        %v2073 = vshrl.u32 %v2072, 7
        %v2074 = vsub.s32 %v2071, %v2073
        %v2075 = vrot.slane %v2061, %v2074
        %v2076 = vcombine.low %v2030, %v2034
        %v2077 = vcombine.high %v2030, %v2034
        %v2079 = vunpack.c.l.s4 1983009808
        %v2080 = vunpack.c.0.s8 %v2079
        %v2081 = vlaneseq
        %v2082 = vshrl.u32 %v2081, 7
        %v2083 = vsub.s32 %v2080, %v2082
        %v2084 = vrot.slane %v2076, %v2083
        %v2086 = vunpack.c.l.s4 1983009808
        %v2087 = vunpack.c.0.s8 %v2086
        %v2088 = vlaneseq
        %v2089 = vshrl.u32 %v2088, 7
        %v2090 = vsub.s32 %v2087, %v2089
        %v2091 = vrot.slane %v2077, %v2090
        %v2092 = vcombine.low %v2036, %v2040
        %v2093 = vcombine.high %v2036, %v2040
        %v2095 = vunpack.c.l.s4 1983009808
        %v2096 = vunpack.c.0.s8 %v2095
        %v2097 = vlaneseq
        %v2098 = vshrl.u32 %v2097, 7
        %v2099 = vsub.s32 %v2096, %v2098
        %v2100 = vrot.slane %v2092, %v2099
        %v2102 = vunpack.c.l.s4 1983009808
        %v2103 = vunpack.c.0.s8 %v2102
        %v2104 = vlaneseq
        %v2105 = vshrl.u32 %v2104, 7
        %v2106 = vsub.s32 %v2103, %v2105
        %v2107 = vrot.slane %v2093, %v2106
        %v2108 = vcombine.low %v2038, %v2042
        %v2109 = vcombine.high %v2038, %v2042
        %v2111 = vunpack.c.l.s4 1983009808
        %v2112 = vunpack.c.0.s8 %v2111
        %v2113 = vlaneseq
        %v2114 = vshrl.u32 %v2113, 7
        %v2115 = vsub.s32 %v2112, %v2114
        %v2116 = vrot.slane %v2108, %v2115
        %v2118 = vunpack.c.l.s4 1983009808
        %v2119 = vunpack.c.0.s8 %v2118
        %v2120 = vlaneseq
        %v2121 = vshrl.u32 %v2120, 7
        %v2122 = vsub.s32 %v2119, %v2121
        %v2123 = vrot.slane %v2109, %v2122
        %v2124 = vcombine.low %v2068, %v2084
        %v2125 = vcombine.high %v2068, %v2084
        %v2127 = vunpack.c.l.s4 1934713408
        %v2128 = vunpack.c.0.s8 %v2127
        %v2129 = vlaneseq
        %v2130 = vshrl.u32 %v2129, 7
        %v2131 = vsub.s32 %v2128, %v2130
        %v2132 = vrot.slane %v2124, %v2131
        %v2134 = vunpack.c.l.s4 1934713408
        %v2135 = vunpack.c.0.s8 %v2134
        %v2136 = vlaneseq
        %v2137 = vshrl.u32 %v2136, 7
        %v2138 = vsub.s32 %v2135, %v2137
        %v2139 = vrot.slane %v2125, %v2138
        %v2140 = vcombine.low %v2075, %v2091
        %v2141 = vcombine.high %v2075, %v2091
        %v2143 = vunpack.c.l.s4 1934713408
        %v2144 = vunpack.c.0.s8 %v2143
        %v2145 = vlaneseq
        %v2146 = vshrl.u32 %v2145, 7
        %v2147 = vsub.s32 %v2144, %v2146
        %v2148 = vrot.slane %v2140, %v2147
        %v2150 = vunpack.c.l.s4 1934713408
        %v2151 = vunpack.c.0.s8 %v2150
        %v2152 = vlaneseq
        %v2153 = vshrl.u32 %v2152, 7
        %v2154 = vsub.s32 %v2151, %v2153
        %v2155 = vrot.slane %v2141, %v2154
        %v2156 = vcombine.low %v2100, %v2116
        %v2157 = vcombine.high %v2100, %v2116
        %v2159 = vunpack.c.l.s4 1934713408
        %v2160 = vunpack.c.0.s8 %v2159
        %v2161 = vlaneseq
        %v2162 = vshrl.u32 %v2161, 7
        %v2163 = vsub.s32 %v2160, %v2162
        %v2164 = vrot.slane %v2156, %v2163
        %v2166 = vunpack.c.l.s4 1934713408
        %v2167 = vunpack.c.0.s8 %v2166
        %v2168 = vlaneseq
        %v2169 = vshrl.u32 %v2168, 7
        %v2170 = vsub.s32 %v2167, %v2169
        %v2171 = vrot.slane %v2157, %v2170
        %v2172 = vcombine.low %v2107, %v2123
        %v2173 = vcombine.high %v2107, %v2123
        %v2175 = vunpack.c.l.s4 1934713408
        %v2176 = vunpack.c.0.s8 %v2175
        %v2177 = vlaneseq
        %v2178 = vshrl.u32 %v2177, 7
        %v2179 = vsub.s32 %v2176, %v2178
        %v2180 = vrot.slane %v2172, %v2179
        %v2182 = vunpack.c.l.s4 1934713408
        %v2183 = vunpack.c.0.s8 %v2182
        %v2184 = vlaneseq
        %v2185 = vshrl.u32 %v2184, 7
        %v2186 = vsub.s32 %v2183, %v2185
        %v2187 = vrot.slane %v2173, %v2186
        %v2188 = vcombine.low %v2132, %v2164
        %v2189 = vcombine.high %v2132, %v2164
        %v2190 = vcombine.low %v2139, %v2171
        %v2191 = vcombine.high %v2139, %v2171
        %v2192 = vcombine.low %v2148, %v2180
        %v2193 = vcombine.high %v2148, %v2180
        %v2194 = vcombine.low %v2155, %v2187
        %v2195 = vcombine.high %v2155, %v2187
        %v2196 = vcombine.low %v2044, %v2048
        %v2197 = vcombine.high %v2044, %v2048
        %v2199 = vunpack.c.l.s4 1983009808
        %v2200 = vunpack.c.0.s8 %v2199
        %v2201 = vlaneseq
        %v2202 = vshrl.u32 %v2201, 7
        %v2203 = vsub.s32 %v2200, %v2202
        %v2204 = vrot.slane %v2196, %v2203
        %v2206 = vunpack.c.l.s4 1983009808
        %v2207 = vunpack.c.0.s8 %v2206
        %v2208 = vlaneseq
        %v2209 = vshrl.u32 %v2208, 7
        %v2210 = vsub.s32 %v2207, %v2209
        %v2211 = vrot.slane %v2197, %v2210
        %v2212 = vcombine.low %v2046, %v2050
        %v2213 = vcombine.high %v2046, %v2050
        %v2215 = vunpack.c.l.s4 1983009808
        %v2216 = vunpack.c.0.s8 %v2215
        %v2217 = vlaneseq
        %v2218 = vshrl.u32 %v2217, 7
        %v2219 = vsub.s32 %v2216, %v2218
        %v2220 = vrot.slane %v2212, %v2219
        %v2222 = vunpack.c.l.s4 1983009808
        %v2223 = vunpack.c.0.s8 %v2222
        %v2224 = vlaneseq
        %v2225 = vshrl.u32 %v2224, 7
        %v2226 = vsub.s32 %v2223, %v2225
        %v2227 = vrot.slane %v2213, %v2226
        %v2228 = vcombine.low %v2052, %v2056
        %v2229 = vcombine.high %v2052, %v2056
        %v2231 = vunpack.c.l.s4 1983009808
        %v2232 = vunpack.c.0.s8 %v2231
        %v2233 = vlaneseq
        %v2234 = vshrl.u32 %v2233, 7
        %v2235 = vsub.s32 %v2232, %v2234
        %v2236 = vrot.slane %v2228, %v2235
        %v2238 = vunpack.c.l.s4 1983009808
        %v2239 = vunpack.c.0.s8 %v2238
        %v2240 = vlaneseq
        %v2241 = vshrl.u32 %v2240, 7
        %v2242 = vsub.s32 %v2239, %v2241
        %v2243 = vrot.slane %v2229, %v2242
        %v2244 = vcombine.low %v2054, %v2058
        %v2245 = vcombine.high %v2054, %v2058
        %v2247 = vunpack.c.l.s4 1983009808
        %v2248 = vunpack.c.0.s8 %v2247
        %v2249 = vlaneseq
        %v2250 = vshrl.u32 %v2249, 7
        %v2251 = vsub.s32 %v2248, %v2250
        %v2252 = vrot.slane %v2244, %v2251
        %v2254 = vunpack.c.l.s4 1983009808
        %v2255 = vunpack.c.0.s8 %v2254
        %v2256 = vlaneseq
        %v2257 = vshrl.u32 %v2256, 7
        %v2258 = vsub.s32 %v2255, %v2257
        %v2259 = vrot.slane %v2245, %v2258
        %v2260 = vcombine.low %v2204, %v2220
        %v2261 = vcombine.high %v2204, %v2220
        %v2263 = vunpack.c.l.s4 1934713408
        %v2264 = vunpack.c.0.s8 %v2263
        %v2265 = vlaneseq
        %v2266 = vshrl.u32 %v2265, 7
        %v2267 = vsub.s32 %v2264, %v2266
        %v2268 = vrot.slane %v2260, %v2267
        %v2270 = vunpack.c.l.s4 1934713408
        %v2271 = vunpack.c.0.s8 %v2270
        %v2272 = vlaneseq
        %v2273 = vshrl.u32 %v2272, 7
        %v2274 = vsub.s32 %v2271, %v2273
        %v2275 = vrot.slane %v2261, %v2274
        %v2276 = vcombine.low %v2211, %v2227
        %v2277 = vcombine.high %v2211, %v2227
        %v2279 = vunpack.c.l.s4 1934713408
        %v2280 = vunpack.c.0.s8 %v2279
        %v2281 = vlaneseq
        %v2282 = vshrl.u32 %v2281, 7
        %v2283 = vsub.s32 %v2280, %v2282
        %v2284 = vrot.slane %v2276, %v2283
        %v2286 = vunpack.c.l.s4 1934713408
        %v2287 = vunpack.c.0.s8 %v2286
        %v2288 = vlaneseq
        %v2289 = vshrl.u32 %v2288, 7
        %v2290 = vsub.s32 %v2287, %v2289
        %v2291 = vrot.slane %v2277, %v2290
        %v2292 = vcombine.low %v2236, %v2252
        %v2293 = vcombine.high %v2236, %v2252
        %v2295 = vunpack.c.l.s4 1934713408
        %v2296 = vunpack.c.0.s8 %v2295
        %v2297 = vlaneseq
        %v2298 = vshrl.u32 %v2297, 7
        %v2299 = vsub.s32 %v2296, %v2298
        %v2300 = vrot.slane %v2292, %v2299
        %v2302 = vunpack.c.l.s4 1934713408
        %v2303 = vunpack.c.0.s8 %v2302
        %v2304 = vlaneseq
        %v2305 = vshrl.u32 %v2304, 7
        %v2306 = vsub.s32 %v2303, %v2305
        %v2307 = vrot.slane %v2293, %v2306
        %v2308 = vcombine.low %v2243, %v2259
        %v2309 = vcombine.high %v2243, %v2259
        %v2311 = vunpack.c.l.s4 1934713408
        %v2312 = vunpack.c.0.s8 %v2311
        %v2313 = vlaneseq
        %v2314 = vshrl.u32 %v2313, 7
        %v2315 = vsub.s32 %v2312, %v2314
        %v2316 = vrot.slane %v2308, %v2315
        %v2318 = vunpack.c.l.s4 1934713408
        %v2319 = vunpack.c.0.s8 %v2318
        %v2320 = vlaneseq
        %v2321 = vshrl.u32 %v2320, 7
        %v2322 = vsub.s32 %v2319, %v2321
        %v2323 = vrot.slane %v2309, %v2322
        %v2324 = vcombine.low %v2268, %v2300
        %v2325 = vcombine.high %v2268, %v2300
        %v2326 = vcombine.low %v2275, %v2307
        %v2327 = vcombine.high %v2275, %v2307
        %v2328 = vcombine.low %v2284, %v2316
        %v2329 = vcombine.high %v2284, %v2316
        %v2330 = vcombine.low %v2291, %v2323
        %v2331 = vcombine.high %v2291, %v2323
        %v2332 = vcombine.low %v2029, %v2033
        %v2333 = vcombine.high %v2029, %v2033
        %v2335 = vunpack.c.l.s4 1983009808
        %v2336 = vunpack.c.0.s8 %v2335
        %v2337 = vlaneseq
        %v2338 = vshrl.u32 %v2337, 7
        %v2339 = vsub.s32 %v2336, %v2338
        %v2340 = vrot.slane %v2332, %v2339
        %v2342 = vunpack.c.l.s4 1983009808
        %v2343 = vunpack.c.0.s8 %v2342
        %v2344 = vlaneseq
        %v2345 = vshrl.u32 %v2344, 7
        %v2346 = vsub.s32 %v2343, %v2345
        %v2347 = vrot.slane %v2333, %v2346
        %v2348 = vcombine.low %v2031, %v2035
        %v2349 = vcombine.high %v2031, %v2035
        %v2351 = vunpack.c.l.s4 1983009808
        %v2352 = vunpack.c.0.s8 %v2351
        %v2353 = vlaneseq
        %v2354 = vshrl.u32 %v2353, 7
        %v2355 = vsub.s32 %v2352, %v2354
        %v2356 = vrot.slane %v2348, %v2355
        %v2358 = vunpack.c.l.s4 1983009808
        %v2359 = vunpack.c.0.s8 %v2358
        %v2360 = vlaneseq
        %v2361 = vshrl.u32 %v2360, 7
        %v2362 = vsub.s32 %v2359, %v2361
        %v2363 = vrot.slane %v2349, %v2362
        %v2364 = vcombine.low %v2037, %v2041
        %v2365 = vcombine.high %v2037, %v2041
        %v2367 = vunpack.c.l.s4 1983009808
        %v2368 = vunpack.c.0.s8 %v2367
        %v2369 = vlaneseq
        %v2370 = vshrl.u32 %v2369, 7
        %v2371 = vsub.s32 %v2368, %v2370
        %v2372 = vrot.slane %v2364, %v2371
        %v2374 = vunpack.c.l.s4 1983009808
        %v2375 = vunpack.c.0.s8 %v2374
        %v2376 = vlaneseq
        %v2377 = vshrl.u32 %v2376, 7
        %v2378 = vsub.s32 %v2375, %v2377
        %v2379 = vrot.slane %v2365, %v2378
        %v2380 = vcombine.low %v2039, %v2043
        %v2381 = vcombine.high %v2039, %v2043
        %v2383 = vunpack.c.l.s4 1983009808
        %v2384 = vunpack.c.0.s8 %v2383
        %v2385 = vlaneseq
        %v2386 = vshrl.u32 %v2385, 7
        %v2387 = vsub.s32 %v2384, %v2386
        %v2388 = vrot.slane %v2380, %v2387
        %v2390 = vunpack.c.l.s4 1983009808
        %v2391 = vunpack.c.0.s8 %v2390
        %v2392 = vlaneseq
        %v2393 = vshrl.u32 %v2392, 7
        %v2394 = vsub.s32 %v2391, %v2393
        %v2395 = vrot.slane %v2381, %v2394
        %v2396 = vcombine.low %v2340, %v2356
        %v2397 = vcombine.high %v2340, %v2356
        %v2399 = vunpack.c.l.s4 1934713408
        %v2400 = vunpack.c.0.s8 %v2399
        %v2401 = vlaneseq
        %v2402 = vshrl.u32 %v2401, 7
        %v2403 = vsub.s32 %v2400, %v2402
        %v2404 = vrot.slane %v2396, %v2403
        %v2406 = vunpack.c.l.s4 1934713408
        %v2407 = vunpack.c.0.s8 %v2406
        %v2408 = vlaneseq
        %v2409 = vshrl.u32 %v2408, 7
        %v2410 = vsub.s32 %v2407, %v2409
        %v2411 = vrot.slane %v2397, %v2410
        %v2412 = vcombine.low %v2347, %v2363
        %v2413 = vcombine.high %v2347, %v2363
        %v2415 = vunpack.c.l.s4 1934713408
        %v2416 = vunpack.c.0.s8 %v2415
        %v2417 = vlaneseq
        %v2418 = vshrl.u32 %v2417, 7
        %v2419 = vsub.s32 %v2416, %v2418
        %v2420 = vrot.slane %v2412, %v2419
        %v2422 = vunpack.c.l.s4 1934713408
        %v2423 = vunpack.c.0.s8 %v2422
        %v2424 = vlaneseq
        %v2425 = vshrl.u32 %v2424, 7
        %v2426 = vsub.s32 %v2423, %v2425
        %v2427 = vrot.slane %v2413, %v2426
        %v2428 = vcombine.low %v2372, %v2388
        %v2429 = vcombine.high %v2372, %v2388
        %v2431 = vunpack.c.l.s4 1934713408
        %v2432 = vunpack.c.0.s8 %v2431
        %v2433 = vlaneseq
        %v2434 = vshrl.u32 %v2433, 7
        %v2435 = vsub.s32 %v2432, %v2434
        %v2436 = vrot.slane %v2428, %v2435
        %v2438 = vunpack.c.l.s4 1934713408
        %v2439 = vunpack.c.0.s8 %v2438
        %v2440 = vlaneseq
        %v2441 = vshrl.u32 %v2440, 7
        %v2442 = vsub.s32 %v2439, %v2441
        %v2443 = vrot.slane %v2429, %v2442
        %v2444 = vcombine.low %v2379, %v2395
        %v2445 = vcombine.high %v2379, %v2395
        %v2447 = vunpack.c.l.s4 1934713408
        %v2448 = vunpack.c.0.s8 %v2447
        %v2449 = vlaneseq
        %v2450 = vshrl.u32 %v2449, 7
        %v2451 = vsub.s32 %v2448, %v2450
        %v2452 = vrot.slane %v2444, %v2451
        %v2454 = vunpack.c.l.s4 1934713408
        %v2455 = vunpack.c.0.s8 %v2454
        %v2456 = vlaneseq
        %v2457 = vshrl.u32 %v2456, 7
        %v2458 = vsub.s32 %v2455, %v2457
        %v2459 = vrot.slane %v2445, %v2458
        %v2460 = vcombine.low %v2404, %v2436
        %v2461 = vcombine.high %v2404, %v2436
        %v2462 = vcombine.low %v2411, %v2443
        %v2463 = vcombine.high %v2411, %v2443
        %v2464 = vcombine.low %v2420, %v2452
        %v2465 = vcombine.high %v2420, %v2452
        %v2466 = vcombine.low %v2427, %v2459
        %v2467 = vcombine.high %v2427, %v2459
        %v2468 = vcombine.low %v2045, %v2049
        %v2469 = vcombine.high %v2045, %v2049
        %v2471 = vunpack.c.l.s4 1983009808
        %v2472 = vunpack.c.0.s8 %v2471
        %v2473 = vlaneseq
        %v2474 = vshrl.u32 %v2473, 7
        %v2475 = vsub.s32 %v2472, %v2474
        %v2476 = vrot.slane %v2468, %v2475
        %v2478 = vunpack.c.l.s4 1983009808
        %v2479 = vunpack.c.0.s8 %v2478
        %v2480 = vlaneseq
        %v2481 = vshrl.u32 %v2480, 7
        %v2482 = vsub.s32 %v2479, %v2481
        %v2483 = vrot.slane %v2469, %v2482
        %v2484 = vcombine.low %v2047, %v2051
        %v2485 = vcombine.high %v2047, %v2051
        %v2487 = vunpack.c.l.s4 1983009808
        %v2488 = vunpack.c.0.s8 %v2487
        %v2489 = vlaneseq
        %v2490 = vshrl.u32 %v2489, 7
        %v2491 = vsub.s32 %v2488, %v2490
        %v2492 = vrot.slane %v2484, %v2491
        %v2494 = vunpack.c.l.s4 1983009808
        %v2495 = vunpack.c.0.s8 %v2494
        %v2496 = vlaneseq
        %v2497 = vshrl.u32 %v2496, 7
        %v2498 = vsub.s32 %v2495, %v2497
        %v2499 = vrot.slane %v2485, %v2498
        %v2500 = vcombine.low %v2053, %v2057
        %v2501 = vcombine.high %v2053, %v2057
        %v2503 = vunpack.c.l.s4 1983009808
        %v2504 = vunpack.c.0.s8 %v2503
        %v2505 = vlaneseq
        %v2506 = vshrl.u32 %v2505, 7
        %v2507 = vsub.s32 %v2504, %v2506
        %v2508 = vrot.slane %v2500, %v2507
        %v2510 = vunpack.c.l.s4 1983009808
        %v2511 = vunpack.c.0.s8 %v2510
        %v2512 = vlaneseq
        %v2513 = vshrl.u32 %v2512, 7
        %v2514 = vsub.s32 %v2511, %v2513
        %v2515 = vrot.slane %v2501, %v2514
        %v2516 = vcombine.low %v2055, %v2059
        %v2517 = vcombine.high %v2055, %v2059
        %v2519 = vunpack.c.l.s4 1983009808
        %v2520 = vunpack.c.0.s8 %v2519
        %v2521 = vlaneseq
        %v2522 = vshrl.u32 %v2521, 7
        %v2523 = vsub.s32 %v2520, %v2522
        %v2524 = vrot.slane %v2516, %v2523
        %v2526 = vunpack.c.l.s4 1983009808
        %v2527 = vunpack.c.0.s8 %v2526
        %v2528 = vlaneseq
        %v2529 = vshrl.u32 %v2528, 7
        %v2530 = vsub.s32 %v2527, %v2529
        %v2531 = vrot.slane %v2517, %v2530
        %v2532 = vcombine.low %v2476, %v2492
        %v2533 = vcombine.high %v2476, %v2492
        %v2535 = vunpack.c.l.s4 1934713408
        %v2536 = vunpack.c.0.s8 %v2535
        %v2537 = vlaneseq
        %v2538 = vshrl.u32 %v2537, 7
        %v2539 = vsub.s32 %v2536, %v2538
        %v2540 = vrot.slane %v2532, %v2539
        %v2542 = vunpack.c.l.s4 1934713408
        %v2543 = vunpack.c.0.s8 %v2542
        %v2544 = vlaneseq
        %v2545 = vshrl.u32 %v2544, 7
        %v2546 = vsub.s32 %v2543, %v2545
        %v2547 = vrot.slane %v2533, %v2546
        %v2548 = vcombine.low %v2483, %v2499
        %v2549 = vcombine.high %v2483, %v2499
        %v2551 = vunpack.c.l.s4 1934713408
        %v2552 = vunpack.c.0.s8 %v2551
        %v2553 = vlaneseq
        %v2554 = vshrl.u32 %v2553, 7
        %v2555 = vsub.s32 %v2552, %v2554
        %v2556 = vrot.slane %v2548, %v2555
        %v2558 = vunpack.c.l.s4 1934713408
        %v2559 = vunpack.c.0.s8 %v2558
        %v2560 = vlaneseq
        %v2561 = vshrl.u32 %v2560, 7
        %v2562 = vsub.s32 %v2559, %v2561
        %v2563 = vrot.slane %v2549, %v2562
        %v2564 = vcombine.low %v2508, %v2524
        %v2565 = vcombine.high %v2508, %v2524
        %v2567 = vunpack.c.l.s4 1934713408
        %v2568 = vunpack.c.0.s8 %v2567
        %v2569 = vlaneseq
        %v2570 = vshrl.u32 %v2569, 7
        %v2571 = vsub.s32 %v2568, %v2570
        %v2572 = vrot.slane %v2564, %v2571
        %v2574 = vunpack.c.l.s4 1934713408
        %v2575 = vunpack.c.0.s8 %v2574
        %v2576 = vlaneseq
        %v2577 = vshrl.u32 %v2576, 7
        %v2578 = vsub.s32 %v2575, %v2577
        %v2579 = vrot.slane %v2565, %v2578
        %v2580 = vcombine.low %v2515, %v2531
        %v2581 = vcombine.high %v2515, %v2531
        %v2583 = vunpack.c.l.s4 1934713408
        %v2584 = vunpack.c.0.s8 %v2583
        %v2585 = vlaneseq
        %v2586 = vshrl.u32 %v2585, 7
        %v2587 = vsub.s32 %v2584, %v2586
        %v2588 = vrot.slane %v2580, %v2587
        %v2590 = vunpack.c.l.s4 1934713408
        %v2591 = vunpack.c.0.s8 %v2590
        %v2592 = vlaneseq
        %v2593 = vshrl.u32 %v2592, 7
        %v2594 = vsub.s32 %v2591, %v2593
        %v2595 = vrot.slane %v2581, %v2594
        %v2596 = vcombine.low %v2540, %v2572
        %v2597 = vcombine.high %v2540, %v2572
        %v2598 = vcombine.low %v2547, %v2579
        %v2599 = vcombine.high %v2547, %v2579
        %v2600 = vcombine.low %v2556, %v2588
        %v2601 = vcombine.high %v2556, %v2588
        %v2602 = vcombine.low %v2563, %v2595
        %v2603 = vcombine.high %v2563, %v2595
        %2606 = vrot.lane.b32.xlu0 %v2189, 16
        %v2607 = vpop.permute.xlu0 %2606
        %2608 = vrot.lane.b32.xlu0 %v2325, 16
        %v2609 = vpop.permute.xlu0 %2608
        %2614 = vrot.lane.b32.xlu0 %v2190, 32
        %v2615 = vpop.permute.xlu0 %2614
        %2616 = vrot.lane.b32.xlu0 %v2326, 32
        %v2617 = vpop.permute.xlu0 %2616
        %2622 = vrot.lane.b32.xlu0 %v2191, 48
        %v2623 = vpop.permute.xlu0 %2622
        %2624 = vrot.lane.b32.xlu0 %v2327, 48
        %v2625 = vpop.permute.xlu0 %2624
        %2630 = vrot.lane.b32.xlu0 %v2192, 64
        %v2631 = vpop.permute.xlu0 %2630
        %2632 = vrot.lane.b32.xlu0 %v2328, 64
        %v2633 = vpop.permute.xlu0 %2632
        %2638 = vrot.lane.b32.xlu0 %v2193, 80
        %v2639 = vpop.permute.xlu0 %2638
        %2640 = vrot.lane.b32.xlu0 %v2329, 80
        %v2641 = vpop.permute.xlu0 %2640
        %2646 = vrot.lane.b32.xlu0 %v2194, 96
        %v2647 = vpop.permute.xlu0 %2646
        %2648 = vrot.lane.b32.xlu0 %v2330, 96
        %v2649 = vpop.permute.xlu0 %2648
        %2654 = vrot.lane.b32.xlu0 %v2195, 112
        %v2655 = vpop.permute.xlu0 %2654
        %2656 = vrot.lane.b32.xlu0 %v2331, 112
        %v2657 = vpop.permute.xlu0 %2656
        %2662 = vrot.lane.b32.xlu0 %v2461, 16
        %v2663 = vpop.permute.xlu0 %2662
        %2664 = vrot.lane.b32.xlu0 %v2597, 16
        %v2665 = vpop.permute.xlu0 %2664
        %2670 = vrot.lane.b32.xlu0 %v2462, 32
        %v2671 = vpop.permute.xlu0 %2670
        %2672 = vrot.lane.b32.xlu0 %v2598, 32
        %v2673 = vpop.permute.xlu0 %2672
        %2678 = vrot.lane.b32.xlu0 %v2463, 48
        %v2679 = vpop.permute.xlu0 %2678
        %2680 = vrot.lane.b32.xlu0 %v2599, 48
        %v2681 = vpop.permute.xlu0 %2680
        %2686 = vrot.lane.b32.xlu0 %v2464, 64
        %v2687 = vpop.permute.xlu0 %2686
        %2688 = vrot.lane.b32.xlu0 %v2600, 64
        %v2689 = vpop.permute.xlu0 %2688
        %2694 = vrot.lane.b32.xlu0 %v2465, 80
        %v2695 = vpop.permute.xlu0 %2694
        %2696 = vrot.lane.b32.xlu0 %v2601, 80
        %v2697 = vpop.permute.xlu0 %2696
        %2702 = vrot.lane.b32.xlu0 %v2466, 96
        %v2703 = vpop.permute.xlu0 %2702
        %2704 = vrot.lane.b32.xlu0 %v2602, 96
        %v2705 = vpop.permute.xlu0 %2704
        %2710 = vrot.lane.b32.xlu0 %v2467, 112
        %v2711 = vpop.permute.xlu0 %2710
        %2712 = vrot.lane.b32.xlu0 %v2603, 112
        %v2713 = vpop.permute.xlu0 %2712
        %v2716 = vsel %vm472, %v2188, %v2607
        %v2717 = vsel %vm472, %v2324, %v2609
        %vm2718 = vcmask 261120
        %v2719 = vsel %vm2718, %v2716, %v2615
        %v2720 = vsel %vm2718, %v2717, %v2617
        %vm2721 = vcmask 392192
        %v2722 = vsel %vm2721, %v2719, %v2623
        %v2723 = vsel %vm2721, %v2720, %v2625
        %vm2724 = vcmask 523264
        %v2725 = vsel %vm2724, %v2722, %v2631
        %v2726 = vsel %vm2724, %v2723, %v2633
        %vm2727 = vcmask 654336
        %v2728 = vsel %vm2727, %v2725, %v2639
        %v2729 = vsel %vm2727, %v2726, %v2641
        %vm2730 = vcmask 785408
        %v2731 = vsel %vm2730, %v2728, %v2647
        %v2732 = vsel %vm2730, %v2729, %v2649
        %vm2733 = vcmask 916480
        %v2734 = vsel %vm2733, %v2731, %v2655
        %v2735 = vsel %vm2733, %v2732, %v2657
        %v2736 = vsel %vm472, %v2460, %v2663
        %v2737 = vsel %vm472, %v2596, %v2665
        %v2738 = vsel %vm2718, %v2736, %v2671
        %v2739 = vsel %vm2718, %v2737, %v2673
        %v2740 = vsel %vm2721, %v2738, %v2679
        %v2741 = vsel %vm2721, %v2739, %v2681
        %v2742 = vsel %vm2724, %v2740, %v2687
        %v2743 = vsel %vm2724, %v2741, %v2689
        %v2744 = vsel %vm2727, %v2742, %v2695
        %v2745 = vsel %vm2727, %v2743, %v2697
        %v2746 = vsel %vm2730, %v2744, %v2703
        %v2747 = vsel %vm2730, %v2745, %v2705
        %v2748 = vsel %vm2733, %v2746, %v2711
        %v2749 = vsel %vm2733, %v2747, %v2713
        %2750 = vst [vmem:[%s429] sm:$0xff] %v2734
        %2751 = vst [vmem:[%s429 + $0x8] sm:$0xff] %v2748
        %2752 = vst [vmem:[%s429 + $0x20] sm:$0xff] %v2735
        %2753 = vst [vmem:[%s429 + $0x28] sm:$0xff] %v2749
        %2786 = vrot.lane.b32.xlu0 %v2028, 112
        %v2787 = vpop.permute.xlu0 %2786
        %2788 = vrot.lane.b32.xlu0 %v2029, 112
        %v2789 = vpop.permute.xlu0 %2788
        %2790 = vrot.lane.b32.xlu0 %v2030, 112
        %v2791 = vpop.permute.xlu0 %2790
        %2792 = vrot.lane.b32.xlu0 %v2031, 112
        %v2793 = vpop.permute.xlu0 %2792
        %2794 = vrot.lane.b32.xlu0 %v2032, 112
        %v2795 = vpop.permute.xlu0 %2794
        %2796 = vrot.lane.b32.xlu0 %v2033, 112
        %v2797 = vpop.permute.xlu0 %2796
        %2798 = vrot.lane.b32.xlu0 %v2034, 112
        %v2799 = vpop.permute.xlu0 %2798
        %2800 = vrot.lane.b32.xlu0 %v2035, 112
        %v2801 = vpop.permute.xlu0 %2800
        %2802 = vrot.lane.b32.xlu0 %v2036, 112
        %v2803 = vpop.permute.xlu0 %2802
        %2804 = vrot.lane.b32.xlu0 %v2037, 112
        %v2805 = vpop.permute.xlu0 %2804
        %2806 = vrot.lane.b32.xlu0 %v2038, 112
        %v2807 = vpop.permute.xlu0 %2806
        %2808 = vrot.lane.b32.xlu0 %v2039, 112
        %v2809 = vpop.permute.xlu0 %2808
        %2810 = vrot.lane.b32.xlu0 %v2040, 112
        %v2811 = vpop.permute.xlu0 %2810
        %2812 = vrot.lane.b32.xlu0 %v2041, 112
        %v2813 = vpop.permute.xlu0 %2812
        %2814 = vrot.lane.b32.xlu0 %v2042, 112
        %v2815 = vpop.permute.xlu0 %2814
        %2816 = vrot.lane.b32.xlu0 %v2043, 112
        %v2817 = vpop.permute.xlu0 %2816
        %2818 = vrot.lane.b32.xlu0 %v2044, 112
        %v2819 = vpop.permute.xlu0 %2818
        %2820 = vrot.lane.b32.xlu0 %v2045, 112
        %v2821 = vpop.permute.xlu0 %2820
        %2822 = vrot.lane.b32.xlu0 %v2046, 112
        %v2823 = vpop.permute.xlu0 %2822
        %2824 = vrot.lane.b32.xlu0 %v2047, 112
        %v2825 = vpop.permute.xlu0 %2824
        %2826 = vrot.lane.b32.xlu0 %v2048, 112
        %v2827 = vpop.permute.xlu0 %2826
        %2828 = vrot.lane.b32.xlu0 %v2049, 112
        %v2829 = vpop.permute.xlu0 %2828
        %2830 = vrot.lane.b32.xlu0 %v2050, 112
        %v2831 = vpop.permute.xlu0 %2830
        %2832 = vrot.lane.b32.xlu0 %v2051, 112
        %v2833 = vpop.permute.xlu0 %2832
        %2834 = vrot.lane.b32.xlu0 %v2052, 112
        %v2835 = vpop.permute.xlu0 %2834
        %2836 = vrot.lane.b32.xlu0 %v2053, 112
        %v2837 = vpop.permute.xlu0 %2836
        %2838 = vrot.lane.b32.xlu0 %v2054, 112
        %v2839 = vpop.permute.xlu0 %2838
        %2840 = vrot.lane.b32.xlu0 %v2055, 112
        %v2841 = vpop.permute.xlu0 %2840
        %2842 = vrot.lane.b32.xlu0 %v2056, 112
        %v2843 = vpop.permute.xlu0 %2842
        %2844 = vrot.lane.b32.xlu0 %v2057, 112
        %v2845 = vpop.permute.xlu0 %2844
        %2846 = vrot.lane.b32.xlu0 %v2058, 112
        %v2847 = vpop.permute.xlu0 %2846
        %2848 = vrot.lane.b32.xlu0 %v2059, 112
        %v2849 = vpop.permute.xlu0 %2848
        %v2882 = vcombine.low %v2787, %v2795
        %v2883 = vcombine.high %v2787, %v2795
        %v2885 = vunpack.c.l.s4 1983009808
        %v2886 = vunpack.c.0.s8 %v2885
        %v2887 = vlaneseq
        %v2888 = vshrl.u32 %v2887, 7
        %v2889 = vsub.s32 %v2886, %v2888
        %v2890 = vrot.slane %v2882, %v2889
        %v2892 = vunpack.c.l.s4 1983009808
        %v2893 = vunpack.c.0.s8 %v2892
        %v2894 = vlaneseq
        %v2895 = vshrl.u32 %v2894, 7
        %v2896 = vsub.s32 %v2893, %v2895
        %v2897 = vrot.slane %v2883, %v2896
        %v2898 = vcombine.low %v2791, %v2799
        %v2899 = vcombine.high %v2791, %v2799
        %v2901 = vunpack.c.l.s4 1983009808
        %v2902 = vunpack.c.0.s8 %v2901
        %v2903 = vlaneseq
        %v2904 = vshrl.u32 %v2903, 7
        %v2905 = vsub.s32 %v2902, %v2904
        %v2906 = vrot.slane %v2898, %v2905
        %v2908 = vunpack.c.l.s4 1983009808
        %v2909 = vunpack.c.0.s8 %v2908
        %v2910 = vlaneseq
        %v2911 = vshrl.u32 %v2910, 7
        %v2912 = vsub.s32 %v2909, %v2911
        %v2913 = vrot.slane %v2899, %v2912
        %v2914 = vcombine.low %v2803, %v2811
        %v2915 = vcombine.high %v2803, %v2811
        %v2917 = vunpack.c.l.s4 1983009808
        %v2918 = vunpack.c.0.s8 %v2917
        %v2919 = vlaneseq
        %v2920 = vshrl.u32 %v2919, 7
        %v2921 = vsub.s32 %v2918, %v2920
        %v2922 = vrot.slane %v2914, %v2921
        %v2924 = vunpack.c.l.s4 1983009808
        %v2925 = vunpack.c.0.s8 %v2924
        %v2926 = vlaneseq
        %v2927 = vshrl.u32 %v2926, 7
        %v2928 = vsub.s32 %v2925, %v2927
        %v2929 = vrot.slane %v2915, %v2928
        %v2930 = vcombine.low %v2807, %v2815
        %v2931 = vcombine.high %v2807, %v2815
        %v2933 = vunpack.c.l.s4 1983009808
        %v2934 = vunpack.c.0.s8 %v2933
        %v2935 = vlaneseq
        %v2936 = vshrl.u32 %v2935, 7
        %v2937 = vsub.s32 %v2934, %v2936
        %v2938 = vrot.slane %v2930, %v2937
        %v2940 = vunpack.c.l.s4 1983009808
        %v2941 = vunpack.c.0.s8 %v2940
        %v2942 = vlaneseq
        %v2943 = vshrl.u32 %v2942, 7
        %v2944 = vsub.s32 %v2941, %v2943
        %v2945 = vrot.slane %v2931, %v2944
        %v2946 = vcombine.low %v2890, %v2906
        %v2947 = vcombine.high %v2890, %v2906
        %v2949 = vunpack.c.l.s4 1934713408
        %v2950 = vunpack.c.0.s8 %v2949
        %v2951 = vlaneseq
        %v2952 = vshrl.u32 %v2951, 7
        %v2953 = vsub.s32 %v2950, %v2952
        %v2954 = vrot.slane %v2946, %v2953
        %v2956 = vunpack.c.l.s4 1934713408
        %v2957 = vunpack.c.0.s8 %v2956
        %v2958 = vlaneseq
        %v2959 = vshrl.u32 %v2958, 7
        %v2960 = vsub.s32 %v2957, %v2959
        %v2961 = vrot.slane %v2947, %v2960
        %v2962 = vcombine.low %v2897, %v2913
        %v2963 = vcombine.high %v2897, %v2913
        %v2965 = vunpack.c.l.s4 1934713408
        %v2966 = vunpack.c.0.s8 %v2965
        %v2967 = vlaneseq
        %v2968 = vshrl.u32 %v2967, 7
        %v2969 = vsub.s32 %v2966, %v2968
        %v2970 = vrot.slane %v2962, %v2969
        %v2972 = vunpack.c.l.s4 1934713408
        %v2973 = vunpack.c.0.s8 %v2972
        %v2974 = vlaneseq
        %v2975 = vshrl.u32 %v2974, 7
        %v2976 = vsub.s32 %v2973, %v2975
        %v2977 = vrot.slane %v2963, %v2976
        %v2978 = vcombine.low %v2922, %v2938
        %v2979 = vcombine.high %v2922, %v2938
        %v2981 = vunpack.c.l.s4 1934713408
        %v2982 = vunpack.c.0.s8 %v2981
        %v2983 = vlaneseq
        %v2984 = vshrl.u32 %v2983, 7
        %v2985 = vsub.s32 %v2982, %v2984
        %v2986 = vrot.slane %v2978, %v2985
        %v2988 = vunpack.c.l.s4 1934713408
        %v2989 = vunpack.c.0.s8 %v2988
        %v2990 = vlaneseq
        %v2991 = vshrl.u32 %v2990, 7
        %v2992 = vsub.s32 %v2989, %v2991
        %v2993 = vrot.slane %v2979, %v2992
        %v2994 = vcombine.low %v2929, %v2945
        %v2995 = vcombine.high %v2929, %v2945
        %v2997 = vunpack.c.l.s4 1934713408
        %v2998 = vunpack.c.0.s8 %v2997
        %v2999 = vlaneseq
        %v3000 = vshrl.u32 %v2999, 7
        %v3001 = vsub.s32 %v2998, %v3000
        %v3002 = vrot.slane %v2994, %v3001
        %v3004 = vunpack.c.l.s4 1934713408
        %v3005 = vunpack.c.0.s8 %v3004
        %v3006 = vlaneseq
        %v3007 = vshrl.u32 %v3006, 7
        %v3008 = vsub.s32 %v3005, %v3007
        %v3009 = vrot.slane %v2995, %v3008
        %v3010 = vcombine.low %v2954, %v2986
        %v3011 = vcombine.high %v2954, %v2986
        %v3012 = vcombine.low %v2961, %v2993
        %v3013 = vcombine.high %v2961, %v2993
        %v3014 = vcombine.low %v2970, %v3002
        %v3015 = vcombine.high %v2970, %v3002
        %v3016 = vcombine.low %v2977, %v3009
        %v3017 = vcombine.high %v2977, %v3009
        %v3018 = vcombine.low %v2819, %v2827
        %v3019 = vcombine.high %v2819, %v2827
        %v3021 = vunpack.c.l.s4 1983009808
        %v3022 = vunpack.c.0.s8 %v3021
        %v3023 = vlaneseq
        %v3024 = vshrl.u32 %v3023, 7
        %v3025 = vsub.s32 %v3022, %v3024
        %v3026 = vrot.slane %v3018, %v3025
        %v3028 = vunpack.c.l.s4 1983009808
        %v3029 = vunpack.c.0.s8 %v3028
        %v3030 = vlaneseq
        %v3031 = vshrl.u32 %v3030, 7
        %v3032 = vsub.s32 %v3029, %v3031
        %v3033 = vrot.slane %v3019, %v3032
        %v3034 = vcombine.low %v2823, %v2831
        %v3035 = vcombine.high %v2823, %v2831
        %v3037 = vunpack.c.l.s4 1983009808
        %v3038 = vunpack.c.0.s8 %v3037
        %v3039 = vlaneseq
        %v3040 = vshrl.u32 %v3039, 7
        %v3041 = vsub.s32 %v3038, %v3040
        %v3042 = vrot.slane %v3034, %v3041
        %v3044 = vunpack.c.l.s4 1983009808
        %v3045 = vunpack.c.0.s8 %v3044
        %v3046 = vlaneseq
        %v3047 = vshrl.u32 %v3046, 7
        %v3048 = vsub.s32 %v3045, %v3047
        %v3049 = vrot.slane %v3035, %v3048
        %v3050 = vcombine.low %v2835, %v2843
        %v3051 = vcombine.high %v2835, %v2843
        %v3053 = vunpack.c.l.s4 1983009808
        %v3054 = vunpack.c.0.s8 %v3053
        %v3055 = vlaneseq
        %v3056 = vshrl.u32 %v3055, 7
        %v3057 = vsub.s32 %v3054, %v3056
        %v3058 = vrot.slane %v3050, %v3057
        %v3060 = vunpack.c.l.s4 1983009808
        %v3061 = vunpack.c.0.s8 %v3060
        %v3062 = vlaneseq
        %v3063 = vshrl.u32 %v3062, 7
        %v3064 = vsub.s32 %v3061, %v3063
        %v3065 = vrot.slane %v3051, %v3064
        %v3066 = vcombine.low %v2839, %v2847
        %v3067 = vcombine.high %v2839, %v2847
        %v3069 = vunpack.c.l.s4 1983009808
        %v3070 = vunpack.c.0.s8 %v3069
        %v3071 = vlaneseq
        %v3072 = vshrl.u32 %v3071, 7
        %v3073 = vsub.s32 %v3070, %v3072
        %v3074 = vrot.slane %v3066, %v3073
        %v3076 = vunpack.c.l.s4 1983009808
        %v3077 = vunpack.c.0.s8 %v3076
        %v3078 = vlaneseq
        %v3079 = vshrl.u32 %v3078, 7
        %v3080 = vsub.s32 %v3077, %v3079
        %v3081 = vrot.slane %v3067, %v3080
        %v3082 = vcombine.low %v3026, %v3042
        %v3083 = vcombine.high %v3026, %v3042
        %v3085 = vunpack.c.l.s4 1934713408
        %v3086 = vunpack.c.0.s8 %v3085
        %v3087 = vlaneseq
        %v3088 = vshrl.u32 %v3087, 7
        %v3089 = vsub.s32 %v3086, %v3088
        %v3090 = vrot.slane %v3082, %v3089
        %v3092 = vunpack.c.l.s4 1934713408
        %v3093 = vunpack.c.0.s8 %v3092
        %v3094 = vlaneseq
        %v3095 = vshrl.u32 %v3094, 7
        %v3096 = vsub.s32 %v3093, %v3095
        %v3097 = vrot.slane %v3083, %v3096
        %v3098 = vcombine.low %v3033, %v3049
        %v3099 = vcombine.high %v3033, %v3049
        %v3101 = vunpack.c.l.s4 1934713408
        %v3102 = vunpack.c.0.s8 %v3101
        %v3103 = vlaneseq
        %v3104 = vshrl.u32 %v3103, 7
        %v3105 = vsub.s32 %v3102, %v3104
        %v3106 = vrot.slane %v3098, %v3105
        %v3108 = vunpack.c.l.s4 1934713408
        %v3109 = vunpack.c.0.s8 %v3108
        %v3110 = vlaneseq
        %v3111 = vshrl.u32 %v3110, 7
        %v3112 = vsub.s32 %v3109, %v3111
        %v3113 = vrot.slane %v3099, %v3112
        %v3114 = vcombine.low %v3058, %v3074
        %v3115 = vcombine.high %v3058, %v3074
        %v3117 = vunpack.c.l.s4 1934713408
        %v3118 = vunpack.c.0.s8 %v3117
        %v3119 = vlaneseq
        %v3120 = vshrl.u32 %v3119, 7
        %v3121 = vsub.s32 %v3118, %v3120
        %v3122 = vrot.slane %v3114, %v3121
        %v3124 = vunpack.c.l.s4 1934713408
        %v3125 = vunpack.c.0.s8 %v3124
        %v3126 = vlaneseq
        %v3127 = vshrl.u32 %v3126, 7
        %v3128 = vsub.s32 %v3125, %v3127
        %v3129 = vrot.slane %v3115, %v3128
        %v3130 = vcombine.low %v3065, %v3081
        %v3131 = vcombine.high %v3065, %v3081
        %v3133 = vunpack.c.l.s4 1934713408
        %v3134 = vunpack.c.0.s8 %v3133
        %v3135 = vlaneseq
        %v3136 = vshrl.u32 %v3135, 7
        %v3137 = vsub.s32 %v3134, %v3136
        %v3138 = vrot.slane %v3130, %v3137
        %v3140 = vunpack.c.l.s4 1934713408
        %v3141 = vunpack.c.0.s8 %v3140
        %v3142 = vlaneseq
        %v3143 = vshrl.u32 %v3142, 7
        %v3144 = vsub.s32 %v3141, %v3143
        %v3145 = vrot.slane %v3131, %v3144
        %v3146 = vcombine.low %v3090, %v3122
        %v3147 = vcombine.high %v3090, %v3122
        %v3148 = vcombine.low %v3097, %v3129
        %v3149 = vcombine.high %v3097, %v3129
        %v3150 = vcombine.low %v3106, %v3138
        %v3151 = vcombine.high %v3106, %v3138
        %v3152 = vcombine.low %v3113, %v3145
        %v3153 = vcombine.high %v3113, %v3145
        %v3154 = vcombine.low %v2789, %v2797
        %v3155 = vcombine.high %v2789, %v2797
        %v3157 = vunpack.c.l.s4 1983009808
        %v3158 = vunpack.c.0.s8 %v3157
        %v3159 = vlaneseq
        %v3160 = vshrl.u32 %v3159, 7
        %v3161 = vsub.s32 %v3158, %v3160
        %v3162 = vrot.slane %v3154, %v3161
        %v3164 = vunpack.c.l.s4 1983009808
        %v3165 = vunpack.c.0.s8 %v3164
        %v3166 = vlaneseq
        %v3167 = vshrl.u32 %v3166, 7
        %v3168 = vsub.s32 %v3165, %v3167
        %v3169 = vrot.slane %v3155, %v3168
        %v3170 = vcombine.low %v2793, %v2801
        %v3171 = vcombine.high %v2793, %v2801
        %v3173 = vunpack.c.l.s4 1983009808
        %v3174 = vunpack.c.0.s8 %v3173
        %v3175 = vlaneseq
        %v3176 = vshrl.u32 %v3175, 7
        %v3177 = vsub.s32 %v3174, %v3176
        %v3178 = vrot.slane %v3170, %v3177
        %v3180 = vunpack.c.l.s4 1983009808
        %v3181 = vunpack.c.0.s8 %v3180
        %v3182 = vlaneseq
        %v3183 = vshrl.u32 %v3182, 7
        %v3184 = vsub.s32 %v3181, %v3183
        %v3185 = vrot.slane %v3171, %v3184
        %v3186 = vcombine.low %v2805, %v2813
        %v3187 = vcombine.high %v2805, %v2813
        %v3189 = vunpack.c.l.s4 1983009808
        %v3190 = vunpack.c.0.s8 %v3189
        %v3191 = vlaneseq
        %v3192 = vshrl.u32 %v3191, 7
        %v3193 = vsub.s32 %v3190, %v3192
        %v3194 = vrot.slane %v3186, %v3193
        %v3196 = vunpack.c.l.s4 1983009808
        %v3197 = vunpack.c.0.s8 %v3196
        %v3198 = vlaneseq
        %v3199 = vshrl.u32 %v3198, 7
        %v3200 = vsub.s32 %v3197, %v3199
        %v3201 = vrot.slane %v3187, %v3200
        %v3202 = vcombine.low %v2809, %v2817
        %v3203 = vcombine.high %v2809, %v2817
        %v3205 = vunpack.c.l.s4 1983009808
        %v3206 = vunpack.c.0.s8 %v3205
        %v3207 = vlaneseq
        %v3208 = vshrl.u32 %v3207, 7
        %v3209 = vsub.s32 %v3206, %v3208
        %v3210 = vrot.slane %v3202, %v3209
        %v3212 = vunpack.c.l.s4 1983009808
        %v3213 = vunpack.c.0.s8 %v3212
        %v3214 = vlaneseq
        %v3215 = vshrl.u32 %v3214, 7
        %v3216 = vsub.s32 %v3213, %v3215
        %v3217 = vrot.slane %v3203, %v3216
        %v3218 = vcombine.low %v3162, %v3178
        %v3219 = vcombine.high %v3162, %v3178
        %v3221 = vunpack.c.l.s4 1934713408
        %v3222 = vunpack.c.0.s8 %v3221
        %v3223 = vlaneseq
        %v3224 = vshrl.u32 %v3223, 7
        %v3225 = vsub.s32 %v3222, %v3224
        %v3226 = vrot.slane %v3218, %v3225
        %v3228 = vunpack.c.l.s4 1934713408
        %v3229 = vunpack.c.0.s8 %v3228
        %v3230 = vlaneseq
        %v3231 = vshrl.u32 %v3230, 7
        %v3232 = vsub.s32 %v3229, %v3231
        %v3233 = vrot.slane %v3219, %v3232
        %v3234 = vcombine.low %v3169, %v3185
        %v3235 = vcombine.high %v3169, %v3185
        %v3237 = vunpack.c.l.s4 1934713408
        %v3238 = vunpack.c.0.s8 %v3237
        %v3239 = vlaneseq
        %v3240 = vshrl.u32 %v3239, 7
        %v3241 = vsub.s32 %v3238, %v3240
        %v3242 = vrot.slane %v3234, %v3241
        %v3244 = vunpack.c.l.s4 1934713408
        %v3245 = vunpack.c.0.s8 %v3244
        %v3246 = vlaneseq
        %v3247 = vshrl.u32 %v3246, 7
        %v3248 = vsub.s32 %v3245, %v3247
        %v3249 = vrot.slane %v3235, %v3248
        %v3250 = vcombine.low %v3194, %v3210
        %v3251 = vcombine.high %v3194, %v3210
        %v3253 = vunpack.c.l.s4 1934713408
        %v3254 = vunpack.c.0.s8 %v3253
        %v3255 = vlaneseq
        %v3256 = vshrl.u32 %v3255, 7
        %v3257 = vsub.s32 %v3254, %v3256
        %v3258 = vrot.slane %v3250, %v3257
        %v3260 = vunpack.c.l.s4 1934713408
        %v3261 = vunpack.c.0.s8 %v3260
        %v3262 = vlaneseq
        %v3263 = vshrl.u32 %v3262, 7
        %v3264 = vsub.s32 %v3261, %v3263
        %v3265 = vrot.slane %v3251, %v3264
        %v3266 = vcombine.low %v3201, %v3217
        %v3267 = vcombine.high %v3201, %v3217
        %v3269 = vunpack.c.l.s4 1934713408
        %v3270 = vunpack.c.0.s8 %v3269
        %v3271 = vlaneseq
        %v3272 = vshrl.u32 %v3271, 7
        %v3273 = vsub.s32 %v3270, %v3272
        %v3274 = vrot.slane %v3266, %v3273
        %v3276 = vunpack.c.l.s4 1934713408
        %v3277 = vunpack.c.0.s8 %v3276
        %v3278 = vlaneseq
        %v3279 = vshrl.u32 %v3278, 7
        %v3280 = vsub.s32 %v3277, %v3279
        %v3281 = vrot.slane %v3267, %v3280
        %v3282 = vcombine.low %v3226, %v3258
        %v3283 = vcombine.high %v3226, %v3258
        %v3284 = vcombine.low %v3233, %v3265
        %v3285 = vcombine.high %v3233, %v3265
        %v3286 = vcombine.low %v3242, %v3274
        %v3287 = vcombine.high %v3242, %v3274
        %v3288 = vcombine.low %v3249, %v3281
        %v3289 = vcombine.high %v3249, %v3281
        %v3290 = vcombine.low %v2821, %v2829
        %v3291 = vcombine.high %v2821, %v2829
        %v3293 = vunpack.c.l.s4 1983009808
        %v3294 = vunpack.c.0.s8 %v3293
        %v3295 = vlaneseq
        %v3296 = vshrl.u32 %v3295, 7
        %v3297 = vsub.s32 %v3294, %v3296
        %v3298 = vrot.slane %v3290, %v3297
        %v3300 = vunpack.c.l.s4 1983009808
        %v3301 = vunpack.c.0.s8 %v3300
        %v3302 = vlaneseq
        %v3303 = vshrl.u32 %v3302, 7
        %v3304 = vsub.s32 %v3301, %v3303
        %v3305 = vrot.slane %v3291, %v3304
        %v3306 = vcombine.low %v2825, %v2833
        %v3307 = vcombine.high %v2825, %v2833
        %v3309 = vunpack.c.l.s4 1983009808
        %v3310 = vunpack.c.0.s8 %v3309
        %v3311 = vlaneseq
        %v3312 = vshrl.u32 %v3311, 7
        %v3313 = vsub.s32 %v3310, %v3312
        %v3314 = vrot.slane %v3306, %v3313
        %v3316 = vunpack.c.l.s4 1983009808
        %v3317 = vunpack.c.0.s8 %v3316
        %v3318 = vlaneseq
        %v3319 = vshrl.u32 %v3318, 7
        %v3320 = vsub.s32 %v3317, %v3319
        %v3321 = vrot.slane %v3307, %v3320
        %v3322 = vcombine.low %v2837, %v2845
        %v3323 = vcombine.high %v2837, %v2845
        %v3325 = vunpack.c.l.s4 1983009808
        %v3326 = vunpack.c.0.s8 %v3325
        %v3327 = vlaneseq
        %v3328 = vshrl.u32 %v3327, 7
        %v3329 = vsub.s32 %v3326, %v3328
        %v3330 = vrot.slane %v3322, %v3329
        %v3332 = vunpack.c.l.s4 1983009808
        %v3333 = vunpack.c.0.s8 %v3332
        %v3334 = vlaneseq
        %v3335 = vshrl.u32 %v3334, 7
        %v3336 = vsub.s32 %v3333, %v3335
        %v3337 = vrot.slane %v3323, %v3336
        %v3338 = vcombine.low %v2841, %v2849
        %v3339 = vcombine.high %v2841, %v2849
        %v3341 = vunpack.c.l.s4 1983009808
        %v3342 = vunpack.c.0.s8 %v3341
        %v3343 = vlaneseq
        %v3344 = vshrl.u32 %v3343, 7
        %v3345 = vsub.s32 %v3342, %v3344
        %v3346 = vrot.slane %v3338, %v3345
        %v3348 = vunpack.c.l.s4 1983009808
        %v3349 = vunpack.c.0.s8 %v3348
        %v3350 = vlaneseq
        %v3351 = vshrl.u32 %v3350, 7
        %v3352 = vsub.s32 %v3349, %v3351
        %v3353 = vrot.slane %v3339, %v3352
        %v3354 = vcombine.low %v3298, %v3314
        %v3355 = vcombine.high %v3298, %v3314
        %v3357 = vunpack.c.l.s4 1934713408
        %v3358 = vunpack.c.0.s8 %v3357
        %v3359 = vlaneseq
        %v3360 = vshrl.u32 %v3359, 7
        %v3361 = vsub.s32 %v3358, %v3360
        %v3362 = vrot.slane %v3354, %v3361
        %v3364 = vunpack.c.l.s4 1934713408
        %v3365 = vunpack.c.0.s8 %v3364
        %v3366 = vlaneseq
        %v3367 = vshrl.u32 %v3366, 7
        %v3368 = vsub.s32 %v3365, %v3367
        %v3369 = vrot.slane %v3355, %v3368
        %v3370 = vcombine.low %v3305, %v3321
        %v3371 = vcombine.high %v3305, %v3321
        %v3373 = vunpack.c.l.s4 1934713408
        %v3374 = vunpack.c.0.s8 %v3373
        %v3375 = vlaneseq
        %v3376 = vshrl.u32 %v3375, 7
        %v3377 = vsub.s32 %v3374, %v3376
        %v3378 = vrot.slane %v3370, %v3377
        %v3380 = vunpack.c.l.s4 1934713408
        %v3381 = vunpack.c.0.s8 %v3380
        %v3382 = vlaneseq
        %v3383 = vshrl.u32 %v3382, 7
        %v3384 = vsub.s32 %v3381, %v3383
        %v3385 = vrot.slane %v3371, %v3384
        %v3386 = vcombine.low %v3330, %v3346
        %v3387 = vcombine.high %v3330, %v3346
        %v3389 = vunpack.c.l.s4 1934713408
        %v3390 = vunpack.c.0.s8 %v3389
        %v3391 = vlaneseq
        %v3392 = vshrl.u32 %v3391, 7
        %v3393 = vsub.s32 %v3390, %v3392
        %v3394 = vrot.slane %v3386, %v3393
        %v3396 = vunpack.c.l.s4 1934713408
        %v3397 = vunpack.c.0.s8 %v3396
        %v3398 = vlaneseq
        %v3399 = vshrl.u32 %v3398, 7
        %v3400 = vsub.s32 %v3397, %v3399
        %v3401 = vrot.slane %v3387, %v3400
        %v3402 = vcombine.low %v3337, %v3353
        %v3403 = vcombine.high %v3337, %v3353
        %v3405 = vunpack.c.l.s4 1934713408
        %v3406 = vunpack.c.0.s8 %v3405
        %v3407 = vlaneseq
        %v3408 = vshrl.u32 %v3407, 7
        %v3409 = vsub.s32 %v3406, %v3408
        %v3410 = vrot.slane %v3402, %v3409
        %v3412 = vunpack.c.l.s4 1934713408
        %v3413 = vunpack.c.0.s8 %v3412
        %v3414 = vlaneseq
        %v3415 = vshrl.u32 %v3414, 7
        %v3416 = vsub.s32 %v3413, %v3415
        %v3417 = vrot.slane %v3403, %v3416
        %v3418 = vcombine.low %v3362, %v3394
        %v3419 = vcombine.high %v3362, %v3394
        %v3420 = vcombine.low %v3369, %v3401
        %v3421 = vcombine.high %v3369, %v3401
        %v3422 = vcombine.low %v3378, %v3410
        %v3423 = vcombine.high %v3378, %v3410
        %v3424 = vcombine.low %v3385, %v3417
        %v3425 = vcombine.high %v3385, %v3417
        %3428 = vrot.lane.b32.xlu0 %v3011, 16
        %v3429 = vpop.permute.xlu0 %3428
        %3430 = vrot.lane.b32.xlu0 %v3147, 16
        %v3431 = vpop.permute.xlu0 %3430
        %3436 = vrot.lane.b32.xlu0 %v3012, 32
        %v3437 = vpop.permute.xlu0 %3436
        %3438 = vrot.lane.b32.xlu0 %v3148, 32
        %v3439 = vpop.permute.xlu0 %3438
        %3444 = vrot.lane.b32.xlu0 %v3013, 48
        %v3445 = vpop.permute.xlu0 %3444
        %3446 = vrot.lane.b32.xlu0 %v3149, 48
        %v3447 = vpop.permute.xlu0 %3446
        %3452 = vrot.lane.b32.xlu0 %v3014, 64
        %v3453 = vpop.permute.xlu0 %3452
        %3454 = vrot.lane.b32.xlu0 %v3150, 64
        %v3455 = vpop.permute.xlu0 %3454
        %3460 = vrot.lane.b32.xlu0 %v3015, 80
        %v3461 = vpop.permute.xlu0 %3460
        %3462 = vrot.lane.b32.xlu0 %v3151, 80
        %v3463 = vpop.permute.xlu0 %3462
        %3468 = vrot.lane.b32.xlu0 %v3016, 96
        %v3469 = vpop.permute.xlu0 %3468
        %3470 = vrot.lane.b32.xlu0 %v3152, 96
        %v3471 = vpop.permute.xlu0 %3470
        %3476 = vrot.lane.b32.xlu0 %v3017, 112
        %v3477 = vpop.permute.xlu0 %3476
        %3478 = vrot.lane.b32.xlu0 %v3153, 112
        %v3479 = vpop.permute.xlu0 %3478
        %3484 = vrot.lane.b32.xlu0 %v3283, 16
        %v3485 = vpop.permute.xlu0 %3484
        %3486 = vrot.lane.b32.xlu0 %v3419, 16
        %v3487 = vpop.permute.xlu0 %3486
        %3492 = vrot.lane.b32.xlu0 %v3284, 32
        %v3493 = vpop.permute.xlu0 %3492
        %3494 = vrot.lane.b32.xlu0 %v3420, 32
        %v3495 = vpop.permute.xlu0 %3494
        %3500 = vrot.lane.b32.xlu0 %v3285, 48
        %v3501 = vpop.permute.xlu0 %3500
        %3502 = vrot.lane.b32.xlu0 %v3421, 48
        %v3503 = vpop.permute.xlu0 %3502
        %3508 = vrot.lane.b32.xlu0 %v3286, 64
        %v3509 = vpop.permute.xlu0 %3508
        %3510 = vrot.lane.b32.xlu0 %v3422, 64
        %v3511 = vpop.permute.xlu0 %3510
        %3516 = vrot.lane.b32.xlu0 %v3287, 80
        %v3517 = vpop.permute.xlu0 %3516
        %3518 = vrot.lane.b32.xlu0 %v3423, 80
        %v3519 = vpop.permute.xlu0 %3518
        %3524 = vrot.lane.b32.xlu0 %v3288, 96
        %v3525 = vpop.permute.xlu0 %3524
        %3526 = vrot.lane.b32.xlu0 %v3424, 96
        %v3527 = vpop.permute.xlu0 %3526
        %3532 = vrot.lane.b32.xlu0 %v3289, 112
        %v3533 = vpop.permute.xlu0 %3532
        %3534 = vrot.lane.b32.xlu0 %v3425, 112
        %v3535 = vpop.permute.xlu0 %3534
        %v3538 = vsel %vm472, %v3010, %v3429
        %v3539 = vsel %vm472, %v3146, %v3431
        %v3540 = vsel %vm2718, %v3538, %v3437
        %v3541 = vsel %vm2718, %v3539, %v3439
        %v3542 = vsel %vm2721, %v3540, %v3445
        %v3543 = vsel %vm2721, %v3541, %v3447
        %v3544 = vsel %vm2724, %v3542, %v3453
        %v3545 = vsel %vm2724, %v3543, %v3455
        %v3546 = vsel %vm2727, %v3544, %v3461
        %v3547 = vsel %vm2727, %v3545, %v3463
        %v3548 = vsel %vm2730, %v3546, %v3469
        %v3549 = vsel %vm2730, %v3547, %v3471
        %v3550 = vsel %vm2733, %v3548, %v3477
        %v3551 = vsel %vm2733, %v3549, %v3479
        %v3552 = vsel %vm472, %v3282, %v3485
        %v3553 = vsel %vm472, %v3418, %v3487
        %v3554 = vsel %vm2718, %v3552, %v3493
        %v3555 = vsel %vm2718, %v3553, %v3495
        %v3556 = vsel %vm2721, %v3554, %v3501
        %v3557 = vsel %vm2721, %v3555, %v3503
        %v3558 = vsel %vm2724, %v3556, %v3509
        %v3559 = vsel %vm2724, %v3557, %v3511
        %v3560 = vsel %vm2727, %v3558, %v3517
        %v3561 = vsel %vm2727, %v3559, %v3519
        %v3562 = vsel %vm2730, %v3560, %v3525
        %v3563 = vsel %vm2730, %v3561, %v3527
        %v3564 = vsel %vm2733, %v3562, %v3533
        %v3565 = vsel %vm2733, %v3563, %v3535
        %3566 = vst [vmem:[%s429 + $0x10] sm:$0xff] %v3550
        %3567 = vst [vmem:[%s429 + $0x18] sm:$0xff] %v3564
        %3568 = vst [vmem:[%s429 + $0x30] sm:$0xff] %v3551
        %3569 = vst [vmem:[%s429 + $0x38] sm:$0xff] %v3565
        %s3570 = smul.u32 2, %s30
        %p3571 = scmp.lt.s32.totalorder %s29, 1
        %s3572 = scalar_select %p3571, %s29, 1
        %p3573 = scmp.lt.s32.totalorder %s3570, 1
        %s3574 = scalar_select %p3573, %s3570, 1
        %s3575 = smul.addr %s3574, 4
        %s3576 = smul.addr %s3572, 8
        %s3577 = sadd.s32 %s3575, %s3576
        %s3578 = smul.addr %s3577, 8
        %s3579 = scalar_lea.vmem %s8, %s3578
        // Predicated region
        $region65: #{decoder_block_forward.1} parent=51 // pred_check
          %p3580 = pneg %p247
        $region66: #{decoder_block_forward.1} parent=51 // pred_check_branch
          %3582 = sbr.rel (%p3580) target = $region68
        $region67: #{decoder_block_forward.1} parent=51 // pred_region
          %s3583 = smul.u32 2, %s30
        $region68: #{decoder_block_forward.1} parent=51 // pred_fallthru
          _
      $region52: #{decoder_block_forward.1} parent=5 // pred_fallthru
        _
      %p3584 = scmp.le.s32.totalorder 2, %s20
      // Predicated region
      $region69: #{decoder_block_forward.1} parent=5 // pred_check
        %p3585 = pneg %p3584
      $region70: #{decoder_block_forward.1} parent=5 // pred_check_branch
        %3587 = sbr.rel (%p3585) target = $region72
      $region71: #{decoder_block_forward.1} parent=5 // pred_region
        %s3588 = ssub.s32 %s20, 2
        // Predicated region
        $region73: #{decoder_block_forward.1} parent=71 // pred_check
          %p3589 = pneg %p253
        $region74: #{decoder_block_forward.1} parent=71 // pred_check_branch
          %3591 = sbr.rel (%p3589) target = $region76
        $region75: #{decoder_block_forward.1} parent=71 // pred_region
          %s3592 = smul.u32 2, %s32
          %p3593 = scmp.lt.s32.totalorder %s31, 1
          %s3594 = scalar_select %p3593, %s31, 1
          %p3595 = scmp.lt.s32.totalorder %s3592, 1
          %s3596 = scalar_select %p3595, %s3592, 1
          %s3597 = smul.addr %s3596, 4
          %s3598 = smul.addr %s3594, 8
          %s3599 = sadd.s32 %s3597, %s3598
          %s3600 = smul.addr %s3599, 8
          %s3601 = scalar_lea.vmem %s8, %s3600
        $region76: #{decoder_block_forward.1} parent=71 // pred_fallthru
          _
      $region72: #{decoder_block_forward.1} parent=5 // pred_fallthru
        _
    $region6: #{decoder_block_forward.1} parent=1 // loop_footer
      %s24 = sadd.s32 1, %s20
    $region7: #{decoder_block_forward.1} parent=1 // loop_footer_branch
      %19 = sbr.rel target = $region3
    $region8: #{decoder_block_forward.1} parent=1 // loop_exit
      _
    %3602 = vsyncpa [#allocation3], 1
    %s3603 = scalar_lea.sflag [#allocation3], 1
    %3604 = vsyncpa %s3603, 1
    %3605 = vsyncpa [#allocation5], 1
    %s3606 = scalar_lea.sflag [#allocation5], 1
    %3607 = vsyncpa %s3606, 1

</llo_original>
